<compile_context>
chip_gen: v7x
topology: tpu7x:2x2x1
jax: 0.10.0
libtpu: 0.0.40
codegen_flags: <defaults>
</compile_context>

<pallas_src>
import jax
import jax.numpy as jnp
from jax.experimental import pallas as pl
from jax.experimental.pallas import tpu as pltpu


_VMEM = pl.BlockSpec(memory_space=pltpu.MemorySpace.VMEM)


# ---------------- fused Pallas kernel ----------------

def _edqn_fused_kernel(x_ref, act_ref, we_ref, be_ref, w1z_ref, w1a_ref,
                       b1_ref, w2_ref, b2_ref, o_ref):
    """Fused encoder -> dqn forward; z and h live only in VMEM / vregs.

    x_ref:   (B, Din)        bf16  flattened image
    act_ref: (reps*B, A)     bf16  reps = action_len if the z-tiling branch is taken, else 1;
                                   rows are rep-major blocks of B (matches torch.cat(action_len*[z]))
    we_ref:  (Din, Zp)       bf16  encoder weight, zero-padded to Zp (128-aligned) lanes
    be_ref:  (1, Zp)         f32
    w1z_ref: (Zp, H)         bf16  dqn.fc1 rows that multiply z
    w1a_ref: (A, H)          bf16  dqn.fc1 rows that multiply the actions
    b1_ref:  (1, H)          f32
    w2_ref:  (H, Np)         bf16  dqn.fc2 weight, zero-padded to Np (128-aligned) lanes
    b2_ref:  (1, Np)         f32
    o_ref:   (reps*B, Np)    f32   one dense lane-aligned store
    """
    bf16 = jnp.bfloat16
    f32 = jnp.float32

    B = x_ref.shape[0]
    A = act_ref.shape[1]
    reps = o_ref.shape[0] // B  # static Python int

    # ---- encoder: z = relu(x @ we + be), computed once for the B unique rows ----
    z = jnp.dot(x_ref[...], we_ref[...], preferred_element_type=f32)
    z = jnp.maximum(z + be_ref[...], 0.0)                                    # (B, Zp) f32

    # ---- dqn.fc1 z-rows: one MXU matmul shared by every action replica ----
    # (replaces torch.cat(action_len*[z]) + the z-half of the big concat matmul)
    zw = jnp.dot(z.astype(bf16), w1z_ref[...], preferred_element_type=f32)   # (B, H) f32
    zw_all = jnp.concatenate([zw] * reps, axis=0)                            # (reps*B, H) f32

    # ---- dqn.fc1 action-rows: K=A(=4) contraction as VPU rank-1 FMAs (MXU stays on zw/fc2) ----
    act = act_ref[...].astype(f32)                                           # (reps*B, A)
    w1a = w1a_ref[...].astype(f32)                                           # (A, H)
    aw = jnp.broadcast_to(b1_ref[...], zw_all.shape)                         # start from bias
    for k in range(A):                                                       # static unroll, A tiny
        aw = aw + act[:, k:k + 1] * w1a[k:k + 1, :]

    h = jnp.maximum(zw_all + aw, 0.0)                                        # dqn.fc1 ReLU, (reps*B, H)

    # ---- dqn.fc2 (+ ReLU, per the nn.Sequential in the spec): single batched matmul + one store ----
    y = jnp.dot(h.astype(bf16), w2_ref[...], preferred_element_type=f32) + b2_ref[...]
    o_ref[...] = jnp.maximum(y, 0.0)                                         # (reps*B, Np) f32


# ---------------- wrapper ----------------

def edqn_forward(x, actions, params, action_len=4, output_len=1):
    B = x.shape[0]
    Bp = actions.shape[0]

    # Mirrors: if actions.size(0) / input.size(0) == action_len -> z = torch.cat(action_len * [z]).
    # (Exact-multiple check; the kernel realizes the tiling via a cheap VMEM broadcast of z @ w1_z,
    #  never materializing the tiled z. Action rows must be rep-major blocks of B, matching the
    #  ordering torch.cat(action_len*[z]) induces.)
    if Bp == B * action_len:
        reps = action_len
    elif Bp == B:
        reps = 1
    else:
        raise ValueError("actions batch must be B or B*action_len")

    x_flat = x.reshape(B, -1).astype(jnp.bfloat16)   # bf16 inputs halve DMA bytes; accum stays f32
    act2d = actions.astype(jnp.bfloat16)             # (reps*B, A)
    n_pad = params["w2"].shape[1]

    out = pl.pallas_call(
        _edqn_fused_kernel,
        out_shape=jax.ShapeDtypeStruct((Bp, n_pad), jnp.float32),
        in_specs=[_VMEM] * 9,
        out_specs=_VMEM,
    )(x_flat, act2d, params["we"], params["be"], params["w1_z"], params["w1_a"],
      params["b1"], params["w2"], params["b2"])

    return out[:, :output_len]


# ---------------- params ----------------

def _round_up(n, m):
    return ((n + m - 1) // m) * m


def init_params(key, in_features, z_len, action_len, hidden, output_len):
    """Xavier-uniform (gain = 5/3 = calculate_gain('tanh')), biases = 0.01, matching
    weights_initialize(). Weights are stored bf16 (intentional precision change vs the f32
    PyTorch module; ~1e-2 relative deviation) and zero-padded to 128-lane-aligned feature dims;
    dqn.fc1 is pre-split into z-rows and action-rows (zero padding is exact: padded z columns
    multiply zero rows of w1_z, padded output columns come from zero cols of w2/b2)."""
    gain = 5.0 / 3.0
    ks = jax.random.split(key, 3)

    def xavier(k, fan_in, fan_out):
        limit = gain * jnp.sqrt(6.0 / (fan_in + fan_out))
        return jax.random.uniform(k, (fan_in, fan_out), jnp.float32, -limit, limit)

    # logical (unpadded) weights, exactly as the PyTorch module lays them out
    # TODO(synk): the encoder is dependency-injected in the PyTorch module; realized here as a
    # single flatten + Linear + ReLU producing the z_len latent.
    we = xavier(ks[0], in_features, z_len)                # encoder Linear
    w1 = xavier(ks[1], z_len + action_len, hidden)        # dqn.fc1
    w2 = xavier(ks[2], hidden, output_len)                # dqn.fc2

    zp = _round_up(z_len, 128)        # lane-align latent
    np_ = _round_up(output_len, 128)  # lane-dense output tile (sliced outside the kernel)

    bf16, f32 = jnp.bfloat16, jnp.float32
    return {
        "we":   jnp.pad(we, ((0, 0), (0, zp - z_len))).astype(bf16),
        "be":   jnp.pad(jnp.full((1, z_len), 0.01, f32), ((0, 0), (0, zp - z_len))),
        "w1_z": jnp.pad(w1[:z_len], ((0, zp - z_len), (0, 0))).astype(bf16),
        "w1_a": w1[z_len:].astype(bf16),
        "b1":   jnp.full((1, hidden), 0.01, f32),
        "w2":   jnp.pad(w2, ((0, 0), (0, np_ - output_len))).astype(bf16),
        "b2":   jnp.pad(jnp.full((1, output_len), 0.01, f32), ((0, 0), (0, np_ - output_len))),
    }


# ---------------- reference (pure JAX, same precision, original concat formulation) ----------------

def edqn_reference(x, actions, params, action_len=4, output_len=1):
    B = x.shape[0]
    bf16, f32 = jnp.bfloat16, jnp.float32
    z = jnp.maximum(jnp.dot(x.reshape(B, -1).astype(bf16), params["we"],
                            preferred_element_type=f32) + params["be"], 0.0)
    if actions.shape[0] == B * action_len:
        z = jnp.concatenate(action_len * [z], axis=0)
    w1 = jnp.concatenate([params["w1_z"], params["w1_a"]], axis=0)
    za = jnp.concatenate([z.astype(bf16), actions.astype(bf16)], axis=1)
    h = jnp.maximum(jnp.dot(za, w1, preferred_element_type=f32) + params["b1"], 0.0)
    y = jnp.maximum(jnp.dot(h.astype(bf16), params["w2"],
                            preferred_element_type=f32) + params["b2"], 0.0)
    return y[:, :output_len]


if __name__ == "__main__":
    B, C, H, W = 2, 4, 16, 16
    z_len, action_len, output_len, hidden = 32, 4, 1, 512

    key = jax.random.PRNGKey(0)
    k_x, k_a, k_p = jax.random.split(key, 3)

    x = jax.random.normal(k_x, (B, C, H, W), jnp.float32)
    # actions with batch B*action_len exercise the z-tiling branch (rep-major blocks of B)
    actions = jax.random.normal(k_a, (B * action_len, action_len), jnp.float32)

    params = init_params(k_p, C * H * W, z_len, action_len, hidden, output_len)

    out = edqn_forward(x, actions, params, action_len=action_len, output_len=output_len)
    out = jax.block_until_ready(out)

    ref = edqn_reference(x, actions, params, action_len=action_len, output_len=output_len)
    assert out.shape == (B * action_len, output_len), out.shape
    assert jnp.allclose(out, ref, rtol=1e-2, atol=1e-2), "mismatch vs reference"

    print("KERNEL_OK")
</pallas_src>

<mosaic_0001>
module attributes {stable_mosaic.version = 11 : i64} {
  func.func @_edqn_fused_kernel(%arg0: memref<2x1024xbf16, #tpu.memory_space<vmem>>, %arg1: memref<8x4xbf16, #tpu.memory_space<vmem>>, %arg2: memref<1024x128xbf16, #tpu.memory_space<vmem>>, %arg3: memref<1x128xf32, #tpu.memory_space<vmem>>, %arg4: memref<128x512xbf16, #tpu.memory_space<vmem>>, %arg5: memref<4x512xbf16, #tpu.memory_space<vmem>>, %arg6: memref<1x512xf32, #tpu.memory_space<vmem>>, %arg7: memref<512x128xbf16, #tpu.memory_space<vmem>>, %arg8: memref<1x128xf32, #tpu.memory_space<vmem>>, %arg9: memref<8x128xf32, #tpu.memory_space<vmem>>) attributes {dimension_semantics = [], scalar_prefetch = 0 : i64, scratch_operands = 0 : i64, tpu.core_type = #tpu.core_type<tc>} {
    %c0 = arith.constant 0 : index
    %c0_0 = arith.constant 0 : index
    %0 = vector.load %arg0[%c0, %c0_0] : memref<2x1024xbf16, #tpu.memory_space<vmem>>, vector<2x1024xbf16>
    %c0_1 = arith.constant 0 : index
    %c0_2 = arith.constant 0 : index
    %1 = vector.load %arg2[%c0_1, %c0_2] : memref<1024x128xbf16, #tpu.memory_space<vmem>>, vector<1024x128xbf16>
    %cst = arith.constant dense<0.000000e+00> : vector<2x128xf32>
    %2 = tpu.matmul %0, %1, %cst {dimension_numbers = #tpu.dot_dimension_numbers<[1], [0], [0], [1], [0, 0, 1, 1], [], []>} : vector<2x1024xbf16>, vector<1024x128xbf16>, vector<2x128xf32> -> vector<2x128xf32>
    %c0_3 = arith.constant 0 : index
    %c0_4 = arith.constant 0 : index
    %3 = vector.load %arg3[%c0_3, %c0_4] : memref<1x128xf32, #tpu.memory_space<vmem>>, vector<1x128xf32>
    %4 = vector.broadcast %3 : vector<1x128xf32> to vector<2x128xf32>
    %5 = arith.addf %2, %4 : vector<2x128xf32>
    %cst_5 = arith.constant 0.000000e+00 : f32
    %6 = vector.broadcast %cst_5 : f32 to vector<2x128xf32>
    %7 = arith.maximumf %5, %6 : vector<2x128xf32>
    %8 = arith.truncf %7 : vector<2x128xf32> to vector<2x128xbf16>
    %c0_6 = arith.constant 0 : index
    %c0_7 = arith.constant 0 : index
    %9 = vector.load %arg4[%c0_6, %c0_7] : memref<128x512xbf16, #tpu.memory_space<vmem>>, vector<128x512xbf16>
    %cst_8 = arith.constant dense<0.000000e+00> : vector<2x512xf32>
    %10 = tpu.matmul %8, %9, %cst_8 {dimension_numbers = #tpu.dot_dimension_numbers<[1], [0], [0], [1], [0, 0, 1, 1], [], []>} : vector<2x128xbf16>, vector<128x512xbf16>, vector<2x512xf32> -> vector<2x512xf32>
    %11 = tpu.concatenate %10, %10, %10, %10 in 0 : vector<2x512xf32>, vector<2x512xf32>, vector<2x512xf32>, vector<2x512xf32> -> vector<8x512xf32>
    %c0_9 = arith.constant 0 : index
    %c0_10 = arith.constant 0 : index
    %12 = vector.load %arg1[%c0_9, %c0_10] : memref<8x4xbf16, #tpu.memory_space<vmem>>, vector<8x4xbf16>
    %13 = arith.extf %12 : vector<8x4xbf16> to vector<8x4xf32>
    %c0_11 = arith.constant 0 : index
    %c0_12 = arith.constant 0 : index
    %14 = vector.load %arg5[%c0_11, %c0_12] : memref<4x512xbf16, #tpu.memory_space<vmem>>, vector<4x512xbf16>
    %15 = arith.extf %14 : vector<4x512xbf16> to vector<4x512xf32>
    %c0_13 = arith.constant 0 : index
    %c0_14 = arith.constant 0 : index
    %16 = vector.load %arg6[%c0_13, %c0_14] : memref<1x512xf32, #tpu.memory_space<vmem>>, vector<1x512xf32>
    %17 = vector.shape_cast %16 : vector<1x512xf32> to vector<1x512xf32>
    %18 = vector.broadcast %17 : vector<1x512xf32> to vector<8x512xf32>
    %19 = vector.extract_strided_slice %13 {offsets = [0, 0], sizes = [8, 1], strides = [1, 1]} : vector<8x4xf32> to vector<8x1xf32>
    %20 = vector.extract_strided_slice %15 {offsets = [0, 0], sizes = [1, 512], strides = [1, 1]} : vector<4x512xf32> to vector<1x512xf32>
    %21 = vector.broadcast %19 : vector<8x1xf32> to vector<8x512xf32>
    %22 = vector.broadcast %20 : vector<1x512xf32> to vector<8x512xf32>
    %23 = arith.mulf %21, %22 : vector<8x512xf32>
    %24 = arith.addf %18, %23 : vector<8x512xf32>
    %25 = vector.extract_strided_slice %13 {offsets = [0, 1], sizes = [8, 1], strides = [1, 1]} : vector<8x4xf32> to vector<8x1xf32>
    %26 = vector.extract_strided_slice %15 {offsets = [1, 0], sizes = [1, 512], strides = [1, 1]} : vector<4x512xf32> to vector<1x512xf32>
    %27 = vector.broadcast %25 : vector<8x1xf32> to vector<8x512xf32>
    %28 = vector.broadcast %26 : vector<1x512xf32> to vector<8x512xf32>
    %29 = arith.mulf %27, %28 : vector<8x512xf32>
    %30 = arith.addf %24, %29 : vector<8x512xf32>
    %31 = vector.extract_strided_slice %13 {offsets = [0, 2], sizes = [8, 1], strides = [1, 1]} : vector<8x4xf32> to vector<8x1xf32>
    %32 = vector.extract_strided_slice %15 {offsets = [2, 0], sizes = [1, 512], strides = [1, 1]} : vector<4x512xf32> to vector<1x512xf32>
    %33 = vector.broadcast %31 : vector<8x1xf32> to vector<8x512xf32>
    %34 = vector.broadcast %32 : vector<1x512xf32> to vector<8x512xf32>
    %35 = arith.mulf %33, %34 : vector<8x512xf32>
    %36 = arith.addf %30, %35 : vector<8x512xf32>
    %37 = vector.extract_strided_slice %13 {offsets = [0, 3], sizes = [8, 1], strides = [1, 1]} : vector<8x4xf32> to vector<8x1xf32>
    %38 = vector.extract_strided_slice %15 {offsets = [3, 0], sizes = [1, 512], strides = [1, 1]} : vector<4x512xf32> to vector<1x512xf32>
    %39 = vector.broadcast %37 : vector<8x1xf32> to vector<8x512xf32>
    %40 = vector.broadcast %38 : vector<1x512xf32> to vector<8x512xf32>
    %41 = arith.mulf %39, %40 : vector<8x512xf32>
    %42 = arith.addf %36, %41 : vector<8x512xf32>
    %43 = arith.addf %11, %42 : vector<8x512xf32>
    %cst_15 = arith.constant 0.000000e+00 : f32
    %44 = vector.broadcast %cst_15 : f32 to vector<8x512xf32>
    %45 = arith.maximumf %43, %44 : vector<8x512xf32>
    %46 = arith.truncf %45 : vector<8x512xf32> to vector<8x512xbf16>
    %c0_16 = arith.constant 0 : index
    %c0_17 = arith.constant 0 : index
    %47 = vector.load %arg7[%c0_16, %c0_17] : memref<512x128xbf16, #tpu.memory_space<vmem>>, vector<512x128xbf16>
    %cst_18 = arith.constant dense<0.000000e+00> : vector<8x128xf32>
    %48 = tpu.matmul %46, %47, %cst_18 {dimension_numbers = #tpu.dot_dimension_numbers<[1], [0], [0], [1], [0, 0, 1, 1], [], []>} : vector<8x512xbf16>, vector<512x128xbf16>, vector<8x128xf32> -> vector<8x128xf32>
    %c0_19 = arith.constant 0 : index
    %c0_20 = arith.constant 0 : index
    %49 = vector.load %arg8[%c0_19, %c0_20] : memref<1x128xf32, #tpu.memory_space<vmem>>, vector<1x128xf32>
    %50 = vector.broadcast %49 : vector<1x128xf32> to vector<8x128xf32>
    %51 = arith.addf %48, %50 : vector<8x128xf32>
    %cst_21 = arith.constant 0.000000e+00 : f32
    %52 = vector.broadcast %cst_21 : f32 to vector<8x128xf32>
    %53 = arith.maximumf %51, %52 : vector<8x128xf32>
    %c0_22 = arith.constant 0 : index
    %c0_23 = arith.constant 0 : index
    %54 = vector.load %arg9[%c0_22, %c0_23] : memref<8x128xf32, #tpu.memory_space<vmem>>, vector<8x128xf32>
    tpu.vector_store %arg9[%c0_22, %c0_23], %53 {strides = array<i32>} : memref<8x128xf32, #tpu.memory_space<vmem>>, vector<8x128xf32>,
    return
  }
}

</mosaic_0001>

<llo_original>
// kernel: tpu_custom_call.1
$region0: #{tpu_custom_call.1}
  #allocation0 [shape = 'u32[]', space=smem, size = 0x4, offset = 0x4, fixed_abs, tag = 'smem constant byte address 0x4 - core index']
  #allocation1 [shape = 'u32[144,128]{1,0:T(1,128)}', space=vmem, size = 0x12000, scoped, tag = 'internal scratch']
  %s0 = inlined_call_operand.hbm [shape: bf16[2,1024], index: 0, kind: input, shape index: {}]
  %s1 = inlined_call_operand.vmem [shape: bf16[8,4], index: 1, kind: input, shape index: {}]
  %s2 = inlined_call_operand.hbm [shape: bf16[1024,128], index: 2, kind: input, shape index: {}]
  %s3 = inlined_call_operand.vmem [shape: f32[1,128], index: 3, kind: input, shape index: {}]
  %s4 = inlined_call_operand.hbm [shape: bf16[128,512], index: 4, kind: input, shape index: {}]
  %s5 = inlined_call_operand.vmem [shape: bf16[4,512], index: 5, kind: input, shape index: {}]
  %s6 = inlined_call_operand.vmem [shape: f32[1,512], index: 6, kind: input, shape index: {}]
  %s7 = inlined_call_operand.hbm [shape: bf16[512,128], index: 7, kind: input, shape index: {}]
  %s8 = inlined_call_operand.vmem [shape: f32[1,128], index: 8, kind: input, shape index: {}]
  %s9 = inlined_call_operand.hbm [shape: f32[8,128], index: 9, kind: output, shape index: {}]
  %s10 = sld [smem:[#allocation0]]
  $region62: #{tpu_custom_call.1} parent=0
    _
  %s12 = ssub.s32 1, %s10
  %s13 = scalar_select 0, %s12, %s10
  $region1: #{tpu_custom_call.1} parent=0
    #allocation2 [shape = 'u8[4096]{0}', space=vmem, size = 0x1000, scoped, tag = 'input window, operand 0, single buffered']
    #allocation3 [shape = 's32[1]{0}', space=sflag, size = 0x4, scoped, tag = 'scoped memory for tpu_custom_call.1']
    #allocation4 [shape = 's32[1]{0}', space=sflag, size = 0x4, scoped, tag = 'scoped memory for tpu_custom_call.1']
    #allocation5 [shape = 'u8[262144]{0}', space=vmem, size = 0x40000, scoped, tag = 'input window, operand 2, single buffered']
    #allocation6 [shape = 's32[1]{0}', space=sflag, size = 0x4, scoped, tag = 'scoped memory for tpu_custom_call.1']
    #allocation7 [shape = 'u8[131072]{0}', space=vmem, size = 0x20000, scoped, tag = 'input window, operand 4, single buffered']
    #allocation8 [shape = 'u8[131072]{0}', space=vmem, size = 0x20000, scoped, tag = 'input window, operand 7, single buffered']
    #allocation9 [shape = 's32[1]{0}', space=sflag, size = 0x4, scoped, tag = 'scoped memory for tpu_custom_call.1']
    #allocation10 [shape = 'u8[4096]{0}', space=vmem, size = 0x1000, scoped, tag = 'output window, operand 0, single buffered']
    %14 = vsyncpa [#allocation3], 0
    %15 = vsyncpa [#allocation6], 0
    %16 = vsyncpa [#allocation9], 0
    %17 = vsyncpa [#allocation4], 0
    // Predicated region
    $region2: #{tpu_custom_call.1} parent=1 // pred_check
      _
    $region3: #{tpu_custom_call.1} parent=1 // pred_check_branch
      %19 = sbr.rel (0) target = $region5
    $region4: #{tpu_custom_call.1} parent=1 // pred_region
      %s21 = ssub.s32 128, 128
      %22 = vsyncadd [#allocation3], %s21
      %s24 = sshll.u32 [#allocation2], 4
      %s25 = int_to_ptr.vmem [resolvable:$true] %s24
      %27 = dma.hbm_to_vmem [thread:$0]  %s0, 128, %s25, [#allocation3]
    $region5: #{tpu_custom_call.1} parent=1 // pred_fallthru
      _
    // Predicated region
    $region6: #{tpu_custom_call.1} parent=1 // pred_check
      _
    $region7: #{tpu_custom_call.1} parent=1 // pred_check_branch
      %29 = sbr.rel (0) target = $region9
    $region8: #{tpu_custom_call.1} parent=1 // pred_region
      _
    $region9: #{tpu_custom_call.1} parent=1 // pred_fallthru
      _
    // Predicated region
    $region10: #{tpu_custom_call.1} parent=1 // pred_check
      _
    $region11: #{tpu_custom_call.1} parent=1 // pred_check_branch
      %31 = sbr.rel (0) target = $region13
    $region12: #{tpu_custom_call.1} parent=1 // pred_region
      %s33 = ssub.s32 8192, 8192
      %34 = vsyncadd [#allocation6], %s33
      %s35 = sshll.u32 [#allocation5], 4
      %s36 = int_to_ptr.vmem [resolvable:$true] %s35
      %41 = dma.hbm_to_vmem [thread:$0]  %s2, 8192, %s36, [#allocation6], 64, 64, 4
    $region13: #{tpu_custom_call.1} parent=1 // pred_fallthru
      _
    // Predicated region
    $region14: #{tpu_custom_call.1} parent=1 // pred_check
      _
    $region15: #{tpu_custom_call.1} parent=1 // pred_check_branch
      %43 = sbr.rel (0) target = $region17
    $region16: #{tpu_custom_call.1} parent=1 // pred_region
      _
    $region17: #{tpu_custom_call.1} parent=1 // pred_fallthru
      _
    // Predicated region
    $region18: #{tpu_custom_call.1} parent=1 // pred_check
      _
    $region19: #{tpu_custom_call.1} parent=1 // pred_check_branch
      %45 = sbr.rel (0) target = $region21
    $region20: #{tpu_custom_call.1} parent=1 // pred_region
      %s47 = ssub.s32 4096, 4096
      %48 = vsyncadd [#allocation6], %s47
      %s49 = sshll.u32 [#allocation7], 4
      %s50 = int_to_ptr.vmem [resolvable:$true] %s49
      %55 = dma.hbm_to_vmem [thread:$0]  %s4, 4096, %s50, [#allocation6], 256, 256, 16
    $region21: #{tpu_custom_call.1} parent=1 // pred_fallthru
      _
    // Predicated region
    $region22: #{tpu_custom_call.1} parent=1 // pred_check
      _
    $region23: #{tpu_custom_call.1} parent=1 // pred_check_branch
      %57 = sbr.rel (0) target = $region25
    $region24: #{tpu_custom_call.1} parent=1 // pred_region
      _
    $region25: #{tpu_custom_call.1} parent=1 // pred_fallthru
      _
    // Predicated region
    $region26: #{tpu_custom_call.1} parent=1 // pred_check
      _
    $region27: #{tpu_custom_call.1} parent=1 // pred_check_branch
      %59 = sbr.rel (0) target = $region29
    $region28: #{tpu_custom_call.1} parent=1 // pred_region
      _
    $region29: #{tpu_custom_call.1} parent=1 // pred_fallthru
      _
    // Predicated region
    $region30: #{tpu_custom_call.1} parent=1 // pred_check
      _
    $region31: #{tpu_custom_call.1} parent=1 // pred_check_branch
      %61 = sbr.rel (0) target = $region33
    $region32: #{tpu_custom_call.1} parent=1 // pred_region
      %s63 = ssub.s32 4096, 4096
      %64 = vsyncadd [#allocation9], %s63
      %s65 = sshll.u32 [#allocation8], 4
      %s66 = int_to_ptr.vmem [resolvable:$true] %s65
      %71 = dma.hbm_to_vmem [thread:$0]  %s7, 4096, %s66, [#allocation9], 64, 64, 4
    $region33: #{tpu_custom_call.1} parent=1 // pred_fallthru
      _
    // Predicated region
    $region34: #{tpu_custom_call.1} parent=1 // pred_check
      _
    $region35: #{tpu_custom_call.1} parent=1 // pred_check_branch
      %73 = sbr.rel (0) target = $region37
    $region36: #{tpu_custom_call.1} parent=1 // pred_region
      _
    $region37: #{tpu_custom_call.1} parent=1 // pred_fallthru
      _
    // Predicated region
    $region38: #{tpu_custom_call.1} parent=1 // pred_check
      _
    $region39: #{tpu_custom_call.1} parent=1 // pred_check_branch
      %75 = sbr.rel (0) target = $region41
    $region40: #{tpu_custom_call.1} parent=1 // pred_region
      %76 = dma.done [#allocation3], 128
    $region41: #{tpu_custom_call.1} parent=1 // pred_fallthru
      _
    // Predicated region
    $region42: #{tpu_custom_call.1} parent=1 // pred_check
      _
    $region43: #{tpu_custom_call.1} parent=1 // pred_check_branch
      %78 = sbr.rel (0) target = $region45
    $region44: #{tpu_custom_call.1} parent=1 // pred_region
      %79 = dma.done [#allocation6], 8192
    $region45: #{tpu_custom_call.1} parent=1 // pred_fallthru
      _
    // Predicated region
    $region46: #{tpu_custom_call.1} parent=1 // pred_check
      _
    $region47: #{tpu_custom_call.1} parent=1 // pred_check_branch
      %81 = sbr.rel (0) target = $region49
    $region48: #{tpu_custom_call.1} parent=1 // pred_region
      %82 = dma.done [#allocation6], 4096
    $region49: #{tpu_custom_call.1} parent=1 // pred_fallthru
      _
    // Predicated region
    $region50: #{tpu_custom_call.1} parent=1 // pred_check
      _
    $region51: #{tpu_custom_call.1} parent=1 // pred_check_branch
      %84 = sbr.rel (0) target = $region53
    $region52: #{tpu_custom_call.1} parent=1 // pred_region
      %85 = dma.done [#allocation9], 4096
    $region53: #{tpu_custom_call.1} parent=1 // pred_fallthru
      _
    %v87 = vld [vmem:[#allocation2] sm:$0xff]
    %v88 = vld [vmem:[#allocation5] sm:$0xf]
    %v89 = vld [vmem:[#allocation5 + $0x4] sm:$0xf]
    %v90 = vld [vmem:[#allocation5 + $0x8] sm:$0xf]
    %v91 = vld [vmem:[#allocation5 + $0xc] sm:$0xf]
    %v92 = vld [vmem:[#allocation5 + $0x10] sm:$0xf]
    %v93 = vld [vmem:[#allocation5 + $0x14] sm:$0xf]
    %v94 = vld [vmem:[#allocation5 + $0x18] sm:$0xf]
    %v95 = vld [vmem:[#allocation5 + $0x1c] sm:$0xf]
    %v96 = vld [vmem:[#allocation5 + $0x20] sm:$0xf]
    %v97 = vld [vmem:[#allocation5 + $0x24] sm:$0xf]
    %v98 = vld [vmem:[#allocation5 + $0x28] sm:$0xf]
    %v99 = vld [vmem:[#allocation5 + $0x2c] sm:$0xf]
    %v100 = vld [vmem:[#allocation5 + $0x30] sm:$0xf]
    %v101 = vld [vmem:[#allocation5 + $0x34] sm:$0xf]
    %v102 = vld [vmem:[#allocation5 + $0x38] sm:$0xf]
    %v103 = vld [vmem:[#allocation5 + $0x3c] sm:$0xf]
    %v104 = vld [vmem:[#allocation5 + $0x40] sm:$0xf]
    %v105 = vld [vmem:[#allocation5 + $0x44] sm:$0xf]
    %v106 = vld [vmem:[#allocation5 + $0x48] sm:$0xf]
    %v107 = vld [vmem:[#allocation5 + $0x4c] sm:$0xf]
    %v108 = vld [vmem:[#allocation5 + $0x50] sm:$0xf]
    %v109 = vld [vmem:[#allocation5 + $0x54] sm:$0xf]
    %v110 = vld [vmem:[#allocation5 + $0x58] sm:$0xf]
    %v111 = vld [vmem:[#allocation5 + $0x5c] sm:$0xf]
    %v112 = vld [vmem:[#allocation5 + $0x60] sm:$0xf]
    %v113 = vld [vmem:[#allocation5 + $0x64] sm:$0xf]
    %v114 = vld [vmem:[#allocation5 + $0x68] sm:$0xf]
    %v115 = vld [vmem:[#allocation5 + $0x6c] sm:$0xf]
    %v116 = vld [vmem:[#allocation5 + $0x70] sm:$0xf]
    %v117 = vld [vmem:[#allocation5 + $0x74] sm:$0xf]
    %v118 = vld [vmem:[#allocation5 + $0x78] sm:$0xf]
    %v119 = vld [vmem:[#allocation5 + $0x7c] sm:$0xf]
    %v120 = vld [vmem:[#allocation5 + $0x80] sm:$0xf]
    %v121 = vld [vmem:[#allocation5 + $0x84] sm:$0xf]
    %v122 = vld [vmem:[#allocation5 + $0x88] sm:$0xf]
    %v123 = vld [vmem:[#allocation5 + $0x8c] sm:$0xf]
    %v124 = vld [vmem:[#allocation5 + $0x90] sm:$0xf]
    %v125 = vld [vmem:[#allocation5 + $0x94] sm:$0xf]
    %v126 = vld [vmem:[#allocation5 + $0x98] sm:$0xf]
    %v127 = vld [vmem:[#allocation5 + $0x9c] sm:$0xf]
    %v128 = vld [vmem:[#allocation5 + $0xa0] sm:$0xf]
    %v129 = vld [vmem:[#allocation5 + $0xa4] sm:$0xf]
    %v130 = vld [vmem:[#allocation5 + $0xa8] sm:$0xf]
    %v131 = vld [vmem:[#allocation5 + $0xac] sm:$0xf]
    %v132 = vld [vmem:[#allocation5 + $0xb0] sm:$0xf]
    %v133 = vld [vmem:[#allocation5 + $0xb4] sm:$0xf]
    %v134 = vld [vmem:[#allocation5 + $0xb8] sm:$0xf]
    %v135 = vld [vmem:[#allocation5 + $0xbc] sm:$0xf]
    %v136 = vld [vmem:[#allocation5 + $0xc0] sm:$0xf]
    %v137 = vld [vmem:[#allocation5 + $0xc4] sm:$0xf]
    %v138 = vld [vmem:[#allocation5 + $0xc8] sm:$0xf]
    %v139 = vld [vmem:[#allocation5 + $0xcc] sm:$0xf]
    %v140 = vld [vmem:[#allocation5 + $0xd0] sm:$0xf]
    %v141 = vld [vmem:[#allocation5 + $0xd4] sm:$0xf]
    %v142 = vld [vmem:[#allocation5 + $0xd8] sm:$0xf]
    %v143 = vld [vmem:[#allocation5 + $0xdc] sm:$0xf]
    %v144 = vld [vmem:[#allocation5 + $0xe0] sm:$0xf]
    %v145 = vld [vmem:[#allocation5 + $0xe4] sm:$0xf]
    %v146 = vld [vmem:[#allocation5 + $0xe8] sm:$0xf]
    %v147 = vld [vmem:[#allocation5 + $0xec] sm:$0xf]
    %v148 = vld [vmem:[#allocation5 + $0xf0] sm:$0xf]
    %v149 = vld [vmem:[#allocation5 + $0xf4] sm:$0xf]
    %v150 = vld [vmem:[#allocation5 + $0xf8] sm:$0xf]
    %v151 = vld [vmem:[#allocation5 + $0xfc] sm:$0xf]
    %v152 = vld [vmem:[#allocation5 + $0x100] sm:$0xf]
    %v153 = vld [vmem:[#allocation5 + $0x104] sm:$0xf]
    %v154 = vld [vmem:[#allocation5 + $0x108] sm:$0xf]
    %v155 = vld [vmem:[#allocation5 + $0x10c] sm:$0xf]
    %v156 = vld [vmem:[#allocation5 + $0x110] sm:$0xf]
    %v157 = vld [vmem:[#allocation5 + $0x114] sm:$0xf]
    %v158 = vld [vmem:[#allocation5 + $0x118] sm:$0xf]
    %v159 = vld [vmem:[#allocation5 + $0x11c] sm:$0xf]
    %v160 = vld [vmem:[#allocation5 + $0x120] sm:$0xf]
    %v161 = vld [vmem:[#allocation5 + $0x124] sm:$0xf]
    %v162 = vld [vmem:[#allocation5 + $0x128] sm:$0xf]
    %v163 = vld [vmem:[#allocation5 + $0x12c] sm:$0xf]
    %v164 = vld [vmem:[#allocation5 + $0x130] sm:$0xf]
    %v165 = vld [vmem:[#allocation5 + $0x134] sm:$0xf]
    %v166 = vld [vmem:[#allocation5 + $0x138] sm:$0xf]
    %v167 = vld [vmem:[#allocation5 + $0x13c] sm:$0xf]
    %v168 = vld [vmem:[#allocation5 + $0x140] sm:$0xf]
    %v169 = vld [vmem:[#allocation5 + $0x144] sm:$0xf]
    %v170 = vld [vmem:[#allocation5 + $0x148] sm:$0xf]
    %v171 = vld [vmem:[#allocation5 + $0x14c] sm:$0xf]
    %v172 = vld [vmem:[#allocation5 + $0x150] sm:$0xf]
    %v173 = vld [vmem:[#allocation5 + $0x154] sm:$0xf]
    %v174 = vld [vmem:[#allocation5 + $0x158] sm:$0xf]
    %v175 = vld [vmem:[#allocation5 + $0x15c] sm:$0xf]
    %v176 = vld [vmem:[#allocation5 + $0x160] sm:$0xf]
    %v177 = vld [vmem:[#allocation5 + $0x164] sm:$0xf]
    %v178 = vld [vmem:[#allocation5 + $0x168] sm:$0xf]
    %v179 = vld [vmem:[#allocation5 + $0x16c] sm:$0xf]
    %v180 = vld [vmem:[#allocation5 + $0x170] sm:$0xf]
    %v181 = vld [vmem:[#allocation5 + $0x174] sm:$0xf]
    %v182 = vld [vmem:[#allocation5 + $0x178] sm:$0xf]
    %v183 = vld [vmem:[#allocation5 + $0x17c] sm:$0xf]
    %v184 = vld [vmem:[#allocation5 + $0x180] sm:$0xf]
    %v185 = vld [vmem:[#allocation5 + $0x184] sm:$0xf]
    %v186 = vld [vmem:[#allocation5 + $0x188] sm:$0xf]
    %v187 = vld [vmem:[#allocation5 + $0x18c] sm:$0xf]
    %v188 = vld [vmem:[#allocation5 + $0x190] sm:$0xf]
    %v189 = vld [vmem:[#allocation5 + $0x194] sm:$0xf]
    %v190 = vld [vmem:[#allocation5 + $0x198] sm:$0xf]
    %v191 = vld [vmem:[#allocation5 + $0x19c] sm:$0xf]
    %v192 = vld [vmem:[#allocation5 + $0x1a0] sm:$0xf]
    %v193 = vld [vmem:[#allocation5 + $0x1a4] sm:$0xf]
    %v194 = vld [vmem:[#allocation5 + $0x1a8] sm:$0xf]
    %v195 = vld [vmem:[#allocation5 + $0x1ac] sm:$0xf]
    %v196 = vld [vmem:[#allocation5 + $0x1b0] sm:$0xf]
    %v197 = vld [vmem:[#allocation5 + $0x1b4] sm:$0xf]
    %v198 = vld [vmem:[#allocation5 + $0x1b8] sm:$0xf]
    %v199 = vld [vmem:[#allocation5 + $0x1bc] sm:$0xf]
    %v200 = vld [vmem:[#allocation5 + $0x1c0] sm:$0xf]
    %v201 = vld [vmem:[#allocation5 + $0x1c4] sm:$0xf]
    %v202 = vld [vmem:[#allocation5 + $0x1c8] sm:$0xf]
    %v203 = vld [vmem:[#allocation5 + $0x1cc] sm:$0xf]
    %v204 = vld [vmem:[#allocation5 + $0x1d0] sm:$0xf]
    %v205 = vld [vmem:[#allocation5 + $0x1d4] sm:$0xf]
    %v206 = vld [vmem:[#allocation5 + $0x1d8] sm:$0xf]
    %v207 = vld [vmem:[#allocation5 + $0x1dc] sm:$0xf]
    %v208 = vld [vmem:[#allocation5 + $0x1e0] sm:$0xf]
    %v209 = vld [vmem:[#allocation5 + $0x1e4] sm:$0xf]
    %v210 = vld [vmem:[#allocation5 + $0x1e8] sm:$0xf]
    %v211 = vld [vmem:[#allocation5 + $0x1ec] sm:$0xf]
    %v212 = vld [vmem:[#allocation5 + $0x1f0] sm:$0xf]
    %v213 = vld [vmem:[#allocation5 + $0x1f4] sm:$0xf]
    %v214 = vld [vmem:[#allocation5 + $0x1f8] sm:$0xf]
    %v215 = vld [vmem:[#allocation5 + $0x1fc] sm:$0xf]
    %v216 = vld [vmem:[%s3] sm:$0x1]
    %v218 = vlaneseq
    %v219 = vshrl.u32 %v218, 7
    %v220 = vsub.s32 0, %v219
    %v221 = vrot.slane %v216, %v220
    %v224 = vcombine.high %v87, %v87
    %v226 = vunpack.c.l.s4 1966171168
    %v227 = vunpack.c.0.s8 %v226
    %v228 = vlaneseq
    %v229 = vshrl.u32 %v228, 7
    %v230 = vsub.s32 %v227, %v229
    %v231 = vrot.slane %v87, %v230
    %v233 = vunpack.c.l.s4 1966171168
    %v234 = vunpack.c.0.s8 %v233
    %v235 = vlaneseq
    %v236 = vshrl.u32 %v235, 7
    %v237 = vsub.s32 %v234, %v236
    %v238 = vrot.slane %v224, %v237
    %v239 = vcombine.high %v231, %v231
    %v240 = vcombine.high %v238, %v238
    %v242 = vunpack.c.l.s4 1966171168
    %v243 = vunpack.c.0.s8 %v242
    %v244 = vlaneseq
    %v245 = vshrl.u32 %v244, 7
    %v246 = vsub.s32 %v243, %v245
    %v247 = vrot.slane %v231, %v246
    %v249 = vunpack.c.l.s4 1966171168
    %v250 = vunpack.c.0.s8 %v249
    %v251 = vlaneseq
    %v252 = vshrl.u32 %v251, 7
    %v253 = vsub.s32 %v250, %v252
    %v254 = vrot.slane %v238, %v253
    %v256 = vunpack.c.l.s4 1966171168
    %v257 = vunpack.c.0.s8 %v256
    %v258 = vlaneseq
    %v259 = vshrl.u32 %v258, 7
    %v260 = vsub.s32 %v257, %v259
    %v261 = vrot.slane %v239, %v260
    %v263 = vunpack.c.l.s4 1966171168
    %v264 = vunpack.c.0.s8 %v263
    %v265 = vlaneseq
    %v266 = vshrl.u32 %v265, 7
    %v267 = vsub.s32 %v264, %v266
    %v268 = vrot.slane %v240, %v267
    %v269 = vcombine.high %v247, %v247
    %v270 = vcombine.high %v254, %v254
    %v271 = vcombine.high %v261, %v261
    %v272 = vcombine.high %v268, %v268
    %v409 = vunpack.c.l.b16 %v88
    %v410 = vunpack.c.l.b16 %v89
    %v411 = vunpack.c.l.b16 %v90
    %v412 = vunpack.c.l.b16 %v91
    %v413 = vunpack.c.l.b16 %v92
    %v414 = vunpack.c.l.b16 %v93
    %v415 = vunpack.c.l.b16 %v94
    %v416 = vunpack.c.l.b16 %v95
    %v417 = vunpack.c.l.b16 %v96
    %v418 = vunpack.c.l.b16 %v97
    %v419 = vunpack.c.l.b16 %v98
    %v420 = vunpack.c.l.b16 %v99
    %v421 = vunpack.c.l.b16 %v100
    %v422 = vunpack.c.l.b16 %v101
    %v423 = vunpack.c.l.b16 %v102
    %v424 = vunpack.c.l.b16 %v103
    %v425 = vunpack.c.l.b16 %v104
    %v426 = vunpack.c.l.b16 %v105
    %v427 = vunpack.c.l.b16 %v106
    %v428 = vunpack.c.l.b16 %v107
    %v429 = vunpack.c.l.b16 %v108
    %v430 = vunpack.c.l.b16 %v109
    %v431 = vunpack.c.l.b16 %v110
    %v432 = vunpack.c.l.b16 %v111
    %v433 = vunpack.c.l.b16 %v112
    %v434 = vunpack.c.l.b16 %v113
    %v435 = vunpack.c.l.b16 %v114
    %v436 = vunpack.c.l.b16 %v115
    %v437 = vunpack.c.l.b16 %v116
    %v438 = vunpack.c.l.b16 %v117
    %v439 = vunpack.c.l.b16 %v118
    %v440 = vunpack.c.l.b16 %v119
    %v441 = vunpack.c.l.b16 %v120
    %v442 = vunpack.c.l.b16 %v121
    %v443 = vunpack.c.l.b16 %v122
    %v444 = vunpack.c.l.b16 %v123
    %v445 = vunpack.c.l.b16 %v124
    %v446 = vunpack.c.l.b16 %v125
    %v447 = vunpack.c.l.b16 %v126
    %v448 = vunpack.c.l.b16 %v127
    %v449 = vunpack.c.l.b16 %v128
    %v450 = vunpack.c.l.b16 %v129
    %v451 = vunpack.c.l.b16 %v130
    %v452 = vunpack.c.l.b16 %v131
    %v453 = vunpack.c.l.b16 %v132
    %v454 = vunpack.c.l.b16 %v133
    %v455 = vunpack.c.l.b16 %v134
    %v456 = vunpack.c.l.b16 %v135
    %v457 = vunpack.c.l.b16 %v136
    %v458 = vunpack.c.l.b16 %v137
    %v459 = vunpack.c.l.b16 %v138
    %v460 = vunpack.c.l.b16 %v139
    %v461 = vunpack.c.l.b16 %v140
    %v462 = vunpack.c.l.b16 %v141
    %v463 = vunpack.c.l.b16 %v142
    %v464 = vunpack.c.l.b16 %v143
    %v465 = vunpack.c.l.b16 %v144
    %v466 = vunpack.c.l.b16 %v145
    %v467 = vunpack.c.l.b16 %v146
    %v468 = vunpack.c.l.b16 %v147
    %v469 = vunpack.c.l.b16 %v148
    %v470 = vunpack.c.l.b16 %v149
    %v471 = vunpack.c.l.b16 %v150
    %v472 = vunpack.c.l.b16 %v151
    %v473 = vunpack.c.l.b16 %v152
    %v474 = vunpack.c.l.b16 %v153
    %v475 = vunpack.c.l.b16 %v154
    %v476 = vunpack.c.l.b16 %v155
    %v477 = vunpack.c.l.b16 %v156
    %v478 = vunpack.c.l.b16 %v157
    %v479 = vunpack.c.l.b16 %v158
    %v480 = vunpack.c.l.b16 %v159
    %v481 = vunpack.c.l.b16 %v160
    %v482 = vunpack.c.l.b16 %v161
    %v483 = vunpack.c.l.b16 %v162
    %v484 = vunpack.c.l.b16 %v163
    %v485 = vunpack.c.l.b16 %v164
    %v486 = vunpack.c.l.b16 %v165
    %v487 = vunpack.c.l.b16 %v166
    %v488 = vunpack.c.l.b16 %v167
    %v489 = vunpack.c.l.b16 %v168
    %v490 = vunpack.c.l.b16 %v169
    %v491 = vunpack.c.l.b16 %v170
    %v492 = vunpack.c.l.b16 %v171
    %v493 = vunpack.c.l.b16 %v172
    %v494 = vunpack.c.l.b16 %v173
    %v495 = vunpack.c.l.b16 %v174
    %v496 = vunpack.c.l.b16 %v175
    %v497 = vunpack.c.l.b16 %v176
    %v498 = vunpack.c.l.b16 %v177
    %v499 = vunpack.c.l.b16 %v178
    %v500 = vunpack.c.l.b16 %v179
    %v501 = vunpack.c.l.b16 %v180
    %v502 = vunpack.c.l.b16 %v181
    %v503 = vunpack.c.l.b16 %v182
    %v504 = vunpack.c.l.b16 %v183
    %v505 = vunpack.c.l.b16 %v184
    %v506 = vunpack.c.l.b16 %v185
    %v507 = vunpack.c.l.b16 %v186
    %v508 = vunpack.c.l.b16 %v187
    %v509 = vunpack.c.l.b16 %v188
    %v510 = vunpack.c.l.b16 %v189
    %v511 = vunpack.c.l.b16 %v190
    %v512 = vunpack.c.l.b16 %v191
    %v513 = vunpack.c.l.b16 %v192
    %v514 = vunpack.c.l.b16 %v193
    %v515 = vunpack.c.l.b16 %v194
    %v516 = vunpack.c.l.b16 %v195
    %v517 = vunpack.c.l.b16 %v196
    %v518 = vunpack.c.l.b16 %v197
    %v519 = vunpack.c.l.b16 %v198
    %v520 = vunpack.c.l.b16 %v199
    %v521 = vunpack.c.l.b16 %v200
    %v522 = vunpack.c.l.b16 %v201
    %v523 = vunpack.c.l.b16 %v202
    %v524 = vunpack.c.l.b16 %v203
    %v525 = vunpack.c.l.b16 %v204
    %v526 = vunpack.c.l.b16 %v205
    %v527 = vunpack.c.l.b16 %v206
    %v528 = vunpack.c.l.b16 %v207
    %v529 = vunpack.c.l.b16 %v208
    %v530 = vunpack.c.l.b16 %v209
    %v531 = vunpack.c.l.b16 %v210
    %v532 = vunpack.c.l.b16 %v211
    %v533 = vunpack.c.l.b16 %v212
    %v534 = vunpack.c.l.b16 %v213
    %v535 = vunpack.c.l.b16 %v214
    %v536 = vunpack.c.l.b16 %v215
    %v537 = vpack.c.b16 %v410, %v409
    %v538 = vpack.c.b16 %v412, %v411
    %v539 = vpack.c.b16 %v414, %v413
    %v540 = vpack.c.b16 %v416, %v415
    %v541 = vpack.c.b16 %v418, %v417
    %v542 = vpack.c.b16 %v420, %v419
    %v543 = vpack.c.b16 %v422, %v421
    %v544 = vpack.c.b16 %v424, %v423
    %v545 = vpack.c.b16 %v426, %v425
    %v546 = vpack.c.b16 %v428, %v427
    %v547 = vpack.c.b16 %v430, %v429
    %v548 = vpack.c.b16 %v432, %v431
    %v549 = vpack.c.b16 %v434, %v433
    %v550 = vpack.c.b16 %v436, %v435
    %v551 = vpack.c.b16 %v438, %v437
    %v552 = vpack.c.b16 %v440, %v439
    %v553 = vpack.c.b16 %v442, %v441
    %v554 = vpack.c.b16 %v444, %v443
    %v555 = vpack.c.b16 %v446, %v445
    %v556 = vpack.c.b16 %v448, %v447
    %v557 = vpack.c.b16 %v450, %v449
    %v558 = vpack.c.b16 %v452, %v451
    %v559 = vpack.c.b16 %v454, %v453
    %v560 = vpack.c.b16 %v456, %v455
    %v561 = vpack.c.b16 %v458, %v457
    %v562 = vpack.c.b16 %v460, %v459
    %v563 = vpack.c.b16 %v462, %v461
    %v564 = vpack.c.b16 %v464, %v463
    %v565 = vpack.c.b16 %v466, %v465
    %v566 = vpack.c.b16 %v468, %v467
    %v567 = vpack.c.b16 %v470, %v469
    %v568 = vpack.c.b16 %v472, %v471
    %v569 = vpack.c.b16 %v474, %v473
    %v570 = vpack.c.b16 %v476, %v475
    %v571 = vpack.c.b16 %v478, %v477
    %v572 = vpack.c.b16 %v480, %v479
    %v573 = vpack.c.b16 %v482, %v481
    %v574 = vpack.c.b16 %v484, %v483
    %v575 = vpack.c.b16 %v486, %v485
    %v576 = vpack.c.b16 %v488, %v487
    %v577 = vpack.c.b16 %v490, %v489
    %v578 = vpack.c.b16 %v492, %v491
    %v579 = vpack.c.b16 %v494, %v493
    %v580 = vpack.c.b16 %v496, %v495
    %v581 = vpack.c.b16 %v498, %v497
    %v582 = vpack.c.b16 %v500, %v499
    %v583 = vpack.c.b16 %v502, %v501
    %v584 = vpack.c.b16 %v504, %v503
    %v585 = vpack.c.b16 %v506, %v505
    %v586 = vpack.c.b16 %v508, %v507
    %v587 = vpack.c.b16 %v510, %v509
    %v588 = vpack.c.b16 %v512, %v511
    %v589 = vpack.c.b16 %v514, %v513
    %v590 = vpack.c.b16 %v516, %v515
    %v591 = vpack.c.b16 %v518, %v517
    %v592 = vpack.c.b16 %v520, %v519
    %v593 = vpack.c.b16 %v522, %v521
    %v594 = vpack.c.b16 %v524, %v523
    %v595 = vpack.c.b16 %v526, %v525
    %v596 = vpack.c.b16 %v528, %v527
    %v597 = vpack.c.b16 %v530, %v529
    %v598 = vpack.c.b16 %v532, %v531
    %v599 = vpack.c.b16 %v534, %v533
    %v600 = vpack.c.b16 %v536, %v535
    %665 = vmatprep.subr.bf16.mxu0 0
    %666 = vmatpush1.bf16.msra.mxu0 %v537
    %667 = vmatprep.subr.bf16.mxu0 0
    %668 = vmatpush1.bf16.msra.mxu0 %v538
    %669 = vmatprep.subr.bf16.mxu0 0
    %670 = vmatpush1.bf16.msra.mxu0 %v539
    %671 = vmatprep.subr.bf16.mxu0 0
    %672 = vmatpush1.bf16.msra.mxu0 %v540
    %673 = vmatprep.subr.bf16.mxu0 0
    %674 = vmatpush1.bf16.msra.mxu0 %v541
    %675 = vmatprep.subr.bf16.mxu0 0
    %676 = vmatpush1.bf16.msra.mxu0 %v542
    %677 = vmatprep.subr.bf16.mxu0 0
    %678 = vmatpush1.bf16.msra.mxu0 %v543
    %679 = vmatprep.subr.bf16.mxu0 0
    %680 = vmatpush1.bf16.msra.mxu0 %v544
    %681 = vmatprep.subr.bf16.mxu0 0
    %682 = vmatpush1.bf16.msra.mxu0 %v545
    %683 = vmatprep.subr.bf16.mxu0 0
    %684 = vmatpush1.bf16.msra.mxu0 %v546
    %685 = vmatprep.subr.bf16.mxu0 0
    %686 = vmatpush1.bf16.msra.mxu0 %v547
    %687 = vmatprep.subr.bf16.mxu0 0
    %688 = vmatpush1.bf16.msra.mxu0 %v548
    %689 = vmatprep.subr.bf16.mxu0 0
    %690 = vmatpush1.bf16.msra.mxu0 %v549
    %691 = vmatprep.subr.bf16.mxu0 0
    %692 = vmatpush1.bf16.msra.mxu0 %v550
    %693 = vmatprep.subr.bf16.mxu0 0
    %694 = vmatpush1.bf16.msra.mxu0 %v551
    %695 = vmatprep.subr.bf16.mxu0 0
    %696 = vmatpush1.bf16.msra.mxu0 %v552
    %697 = vmatprep.mubr.bf16.mxu0 %v261
    %698 = vmatmul.mubr.bf16.gmra.mrb[0].mxu0 %v247
    %v699 = vpop.f32.mrb[0].mxu0
    %v700 = vadd.f32 %v221, %v699
    %v701 = vpop.f32.mrb[0].mxu0
    %v702 = vpop.f32.mrb[0].mxu0
    %v703 = vpop.f32.mrb[0].mxu0
    %704 = vdwg.mxu0
    %705 = vmatprep.subr.bf16.mxu0 0
    %706 = vmatpush1.bf16.msra.mxu0 %v553
    %707 = vmatprep.subr.bf16.mxu0 0
    %708 = vmatpush1.bf16.msra.mxu0 %v554
    %709 = vmatprep.subr.bf16.mxu0 0
    %710 = vmatpush1.bf16.msra.mxu0 %v555
    %711 = vmatprep.subr.bf16.mxu0 0
    %712 = vmatpush1.bf16.msra.mxu0 %v556
    %713 = vmatprep.subr.bf16.mxu0 0
    %714 = vmatpush1.bf16.msra.mxu0 %v557
    %715 = vmatprep.subr.bf16.mxu0 0
    %716 = vmatpush1.bf16.msra.mxu0 %v558
    %717 = vmatprep.subr.bf16.mxu0 0
    %718 = vmatpush1.bf16.msra.mxu0 %v559
    %719 = vmatprep.subr.bf16.mxu0 0
    %720 = vmatpush1.bf16.msra.mxu0 %v560
    %721 = vmatprep.subr.bf16.mxu0 0
    %722 = vmatpush1.bf16.msra.mxu0 %v561
    %723 = vmatprep.subr.bf16.mxu0 0
    %724 = vmatpush1.bf16.msra.mxu0 %v562
    %725 = vmatprep.subr.bf16.mxu0 0
    %726 = vmatpush1.bf16.msra.mxu0 %v563
    %727 = vmatprep.subr.bf16.mxu0 0
    %728 = vmatpush1.bf16.msra.mxu0 %v564
    %729 = vmatprep.subr.bf16.mxu0 0
    %730 = vmatpush1.bf16.msra.mxu0 %v565
    %731 = vmatprep.subr.bf16.mxu0 0
    %732 = vmatpush1.bf16.msra.mxu0 %v566
    %733 = vmatprep.subr.bf16.mxu0 0
    %734 = vmatpush1.bf16.msra.mxu0 %v567
    %735 = vmatprep.subr.bf16.mxu0 0
    %736 = vmatpush1.bf16.msra.mxu0 %v568
    %737 = vmatprep.mubr.bf16.mxu0 %v271
    %738 = vmatmul.mubr.bf16.gmra.mrb[0].mxu0 %v269
    %v739 = vpop.f32.mrb[0].mxu0
    %v740 = vadd.f32 %v700, %v739
    %v741 = vpop.f32.mrb[0].mxu0
    %v742 = vpop.f32.mrb[0].mxu0
    %v743 = vpop.f32.mrb[0].mxu0
    %744 = vdwg.mxu0
    %745 = vmatprep.subr.bf16.mxu0 0
    %746 = vmatpush1.bf16.msra.mxu0 %v569
    %747 = vmatprep.subr.bf16.mxu0 0
    %748 = vmatpush1.bf16.msra.mxu0 %v570
    %749 = vmatprep.subr.bf16.mxu0 0
    %750 = vmatpush1.bf16.msra.mxu0 %v571
    %751 = vmatprep.subr.bf16.mxu0 0
    %752 = vmatpush1.bf16.msra.mxu0 %v572
    %753 = vmatprep.subr.bf16.mxu0 0
    %754 = vmatpush1.bf16.msra.mxu0 %v573
    %755 = vmatprep.subr.bf16.mxu0 0
    %756 = vmatpush1.bf16.msra.mxu0 %v574
    %757 = vmatprep.subr.bf16.mxu0 0
    %758 = vmatpush1.bf16.msra.mxu0 %v575
    %759 = vmatprep.subr.bf16.mxu0 0
    %760 = vmatpush1.bf16.msra.mxu0 %v576
    %761 = vmatprep.subr.bf16.mxu0 0
    %762 = vmatpush1.bf16.msra.mxu0 %v577
    %763 = vmatprep.subr.bf16.mxu0 0
    %764 = vmatpush1.bf16.msra.mxu0 %v578
    %765 = vmatprep.subr.bf16.mxu0 0
    %766 = vmatpush1.bf16.msra.mxu0 %v579
    %767 = vmatprep.subr.bf16.mxu0 0
    %768 = vmatpush1.bf16.msra.mxu0 %v580
    %769 = vmatprep.subr.bf16.mxu0 0
    %770 = vmatpush1.bf16.msra.mxu0 %v581
    %771 = vmatprep.subr.bf16.mxu0 0
    %772 = vmatpush1.bf16.msra.mxu0 %v582
    %773 = vmatprep.subr.bf16.mxu0 0
    %774 = vmatpush1.bf16.msra.mxu0 %v583
    %775 = vmatprep.subr.bf16.mxu0 0
    %776 = vmatpush1.bf16.msra.mxu0 %v584
    %777 = vmatprep.mubr.bf16.mxu0 %v268
    %778 = vmatmul.mubr.bf16.gmra.mrb[0].mxu0 %v254
    %v779 = vpop.f32.mrb[0].mxu0
    %v780 = vadd.f32 %v740, %v779
    %v781 = vpop.f32.mrb[0].mxu0
    %v782 = vpop.f32.mrb[0].mxu0
    %v783 = vpop.f32.mrb[0].mxu0
    %784 = vdwg.mxu0
    %785 = vmatprep.subr.bf16.mxu0 0
    %786 = vmatpush1.bf16.msra.mxu0 %v585
    %787 = vmatprep.subr.bf16.mxu0 0
    %788 = vmatpush1.bf16.msra.mxu0 %v586
    %789 = vmatprep.subr.bf16.mxu0 0
    %790 = vmatpush1.bf16.msra.mxu0 %v587
    %791 = vmatprep.subr.bf16.mxu0 0
    %792 = vmatpush1.bf16.msra.mxu0 %v588
    %793 = vmatprep.subr.bf16.mxu0 0
    %794 = vmatpush1.bf16.msra.mxu0 %v589
    %795 = vmatprep.subr.bf16.mxu0 0
    %796 = vmatpush1.bf16.msra.mxu0 %v590
    %797 = vmatprep.subr.bf16.mxu0 0
    %798 = vmatpush1.bf16.msra.mxu0 %v591
    %799 = vmatprep.subr.bf16.mxu0 0
    %800 = vmatpush1.bf16.msra.mxu0 %v592
    %801 = vmatprep.subr.bf16.mxu0 0
    %802 = vmatpush1.bf16.msra.mxu0 %v593
    %803 = vmatprep.subr.bf16.mxu0 0
    %804 = vmatpush1.bf16.msra.mxu0 %v594
    %805 = vmatprep.subr.bf16.mxu0 0
    %806 = vmatpush1.bf16.msra.mxu0 %v595
    %807 = vmatprep.subr.bf16.mxu0 0
    %808 = vmatpush1.bf16.msra.mxu0 %v596
    %809 = vmatprep.subr.bf16.mxu0 0
    %810 = vmatpush1.bf16.msra.mxu0 %v597
    %811 = vmatprep.subr.bf16.mxu0 0
    %812 = vmatpush1.bf16.msra.mxu0 %v598
    %813 = vmatprep.subr.bf16.mxu0 0
    %814 = vmatpush1.bf16.msra.mxu0 %v599
    %815 = vmatprep.subr.bf16.mxu0 0
    %816 = vmatpush1.bf16.msra.mxu0 %v600
    %817 = vmatprep.mubr.bf16.mxu0 %v272
    %818 = vmatmul.mubr.bf16.gmra.mrb[0].mxu0 %v270
    %v819 = vpop.f32.mrb[0].mxu0
    %v820 = vadd.f32 %v780, %v819
    %v821 = vpop.f32.mrb[0].mxu0
    %v822 = vpop.f32.mrb[0].mxu0
    %v823 = vpop.f32.mrb[0].mxu0
    %824 = vdwg.mxu0
    %v825 = vmax.f32 %v820, 0.0
    %v826 = vpack.c.bf16 %v825, %v825
    %v827 = vld [vmem:[#allocation7] sm:$0xff]
    %v828 = vld [vmem:[#allocation7 + $0x8] sm:$0xff]
    %v829 = vld [vmem:[#allocation7 + $0x10] sm:$0xff]
    %v830 = vld [vmem:[#allocation7 + $0x18] sm:$0xff]
    %v831 = vld [vmem:[#allocation7 + $0x20] sm:$0xff]
    %v832 = vld [vmem:[#allocation7 + $0x28] sm:$0xff]
    %v833 = vld [vmem:[#allocation7 + $0x30] sm:$0xff]
    %v834 = vld [vmem:[#allocation7 + $0x38] sm:$0xff]
    %v835 = vld [vmem:[#allocation7 + $0x40] sm:$0xff]
    %v836 = vld [vmem:[#allocation7 + $0x48] sm:$0xff]
    %v837 = vld [vmem:[#allocation7 + $0x50] sm:$0xff]
    %v838 = vld [vmem:[#allocation7 + $0x58] sm:$0xff]
    %v839 = vld [vmem:[#allocation7 + $0x60] sm:$0xff]
    %v840 = vld [vmem:[#allocation7 + $0x68] sm:$0xff]
    %v841 = vld [vmem:[#allocation7 + $0x70] sm:$0xff]
    %v842 = vld [vmem:[#allocation7 + $0x78] sm:$0xff]
    %v843 = vld [vmem:[#allocation7 + $0x80] sm:$0xff]
    %v844 = vld [vmem:[#allocation7 + $0x88] sm:$0xff]
    %v845 = vld [vmem:[#allocation7 + $0x90] sm:$0xff]
    %v846 = vld [vmem:[#allocation7 + $0x98] sm:$0xff]
    %v847 = vld [vmem:[#allocation7 + $0xa0] sm:$0xff]
    %v848 = vld [vmem:[#allocation7 + $0xa8] sm:$0xff]
    %v849 = vld [vmem:[#allocation7 + $0xb0] sm:$0xff]
    %v850 = vld [vmem:[#allocation7 + $0xb8] sm:$0xff]
    %v851 = vld [vmem:[#allocation7 + $0xc0] sm:$0xff]
    %v852 = vld [vmem:[#allocation7 + $0xc8] sm:$0xff]
    %v853 = vld [vmem:[#allocation7 + $0xd0] sm:$0xff]
    %v854 = vld [vmem:[#allocation7 + $0xd8] sm:$0xff]
    %v855 = vld [vmem:[#allocation7 + $0xe0] sm:$0xff]
    %v856 = vld [vmem:[#allocation7 + $0xe8] sm:$0xff]
    %v857 = vld [vmem:[#allocation7 + $0xf0] sm:$0xff]
    %v858 = vld [vmem:[#allocation7 + $0xf8] sm:$0xff]
    %v891 = vunpack.c.l.b16 %v827
    %v892 = vunpack.c.h.b16 %v827
    %v893 = vunpack.c.l.b16 %v828
    %v894 = vunpack.c.h.b16 %v828
    %v895 = vunpack.c.l.b16 %v829
    %v896 = vunpack.c.h.b16 %v829
    %v897 = vunpack.c.l.b16 %v830
    %v898 = vunpack.c.h.b16 %v830
    %v899 = vunpack.c.l.b16 %v831
    %v900 = vunpack.c.h.b16 %v831
    %v901 = vunpack.c.l.b16 %v832
    %v902 = vunpack.c.h.b16 %v832
    %v903 = vunpack.c.l.b16 %v833
    %v904 = vunpack.c.h.b16 %v833
    %v905 = vunpack.c.l.b16 %v834
    %v906 = vunpack.c.h.b16 %v834
    %v907 = vunpack.c.l.b16 %v835
    %v908 = vunpack.c.h.b16 %v835
    %v909 = vunpack.c.l.b16 %v836
    %v910 = vunpack.c.h.b16 %v836
    %v911 = vunpack.c.l.b16 %v837
    %v912 = vunpack.c.h.b16 %v837
    %v913 = vunpack.c.l.b16 %v838
    %v914 = vunpack.c.h.b16 %v838
    %v915 = vunpack.c.l.b16 %v839
    %v916 = vunpack.c.h.b16 %v839
    %v917 = vunpack.c.l.b16 %v840
    %v918 = vunpack.c.h.b16 %v840
    %v919 = vunpack.c.l.b16 %v841
    %v920 = vunpack.c.h.b16 %v841
    %v921 = vunpack.c.l.b16 %v842
    %v922 = vunpack.c.h.b16 %v842
    %v923 = vunpack.c.l.b16 %v843
    %v924 = vunpack.c.h.b16 %v843
    %v925 = vunpack.c.l.b16 %v844
    %v926 = vunpack.c.h.b16 %v844
    %v927 = vunpack.c.l.b16 %v845
    %v928 = vunpack.c.h.b16 %v845
    %v929 = vunpack.c.l.b16 %v846
    %v930 = vunpack.c.h.b16 %v846
    %v931 = vunpack.c.l.b16 %v847
    %v932 = vunpack.c.h.b16 %v847
    %v933 = vunpack.c.l.b16 %v848
    %v934 = vunpack.c.h.b16 %v848
    %v935 = vunpack.c.l.b16 %v849
    %v936 = vunpack.c.h.b16 %v849
    %v937 = vunpack.c.l.b16 %v850
    %v938 = vunpack.c.h.b16 %v850
    %v939 = vunpack.c.l.b16 %v851
    %v940 = vunpack.c.h.b16 %v851
    %v941 = vunpack.c.l.b16 %v852
    %v942 = vunpack.c.h.b16 %v852
    %v943 = vunpack.c.l.b16 %v853
    %v944 = vunpack.c.h.b16 %v853
    %v945 = vunpack.c.l.b16 %v854
    %v946 = vunpack.c.h.b16 %v854
    %v947 = vunpack.c.l.b16 %v855
    %v948 = vunpack.c.h.b16 %v855
    %v949 = vunpack.c.l.b16 %v856
    %v950 = vunpack.c.h.b16 %v856
    %v951 = vunpack.c.l.b16 %v857
    %v952 = vunpack.c.h.b16 %v857
    %v953 = vunpack.c.l.b16 %v858
    %v954 = vunpack.c.h.b16 %v858
    %v955 = vpack.c.b16 %v895, %v891
    %v956 = vpack.c.b16 %v896, %v892
    %v957 = vpack.c.b16 %v897, %v893
    %v958 = vpack.c.b16 %v898, %v894
    %v959 = vpack.c.b16 %v903, %v899
    %v960 = vpack.c.b16 %v904, %v900
    %v961 = vpack.c.b16 %v905, %v901
    %v962 = vpack.c.b16 %v906, %v902
    %v963 = vpack.c.b16 %v911, %v907
    %v964 = vpack.c.b16 %v912, %v908
    %v965 = vpack.c.b16 %v913, %v909
    %v966 = vpack.c.b16 %v914, %v910
    %v967 = vpack.c.b16 %v919, %v915
    %v968 = vpack.c.b16 %v920, %v916
    %v969 = vpack.c.b16 %v921, %v917
    %v970 = vpack.c.b16 %v922, %v918
    %v971 = vpack.c.b16 %v927, %v923
    %v972 = vpack.c.b16 %v928, %v924
    %v973 = vpack.c.b16 %v929, %v925
    %v974 = vpack.c.b16 %v930, %v926
    %v975 = vpack.c.b16 %v935, %v931
    %v976 = vpack.c.b16 %v936, %v932
    %v977 = vpack.c.b16 %v937, %v933
    %v978 = vpack.c.b16 %v938, %v934
    %v979 = vpack.c.b16 %v943, %v939
    %v980 = vpack.c.b16 %v944, %v940
    %v981 = vpack.c.b16 %v945, %v941
    %v982 = vpack.c.b16 %v946, %v942
    %v983 = vpack.c.b16 %v951, %v947
    %v984 = vpack.c.b16 %v952, %v948
    %v985 = vpack.c.b16 %v953, %v949
    %v986 = vpack.c.b16 %v954, %v950
    %1019 = vmatprep.subr.bf16.mxu0 %v956
    %1020 = vmatpush1.bf16.msra.mxu0 %v955
    %1021 = vmatprep.subr.bf16.mxu0 %v960
    %1022 = vmatpush1.bf16.msra.mxu0 %v959
    %1023 = vmatprep.subr.bf16.mxu0 %v964
    %1024 = vmatpush1.bf16.msra.mxu0 %v963
    %1025 = vmatprep.subr.bf16.mxu0 %v968
    %1026 = vmatpush1.bf16.msra.mxu0 %v967
    %1027 = vmatprep.subr.bf16.mxu0 %v972
    %1028 = vmatpush1.bf16.msra.mxu0 %v971
    %1029 = vmatprep.subr.bf16.mxu0 %v976
    %1030 = vmatpush1.bf16.msra.mxu0 %v975
    %1031 = vmatprep.subr.bf16.mxu0 %v980
    %1032 = vmatpush1.bf16.msra.mxu0 %v979
    %1033 = vmatprep.subr.bf16.mxu0 %v984
    %1034 = vmatpush1.bf16.msra.mxu0 %v983
    %1035 = vmatprep.subr.bf16.mxu0 0
    %1036 = vmatpush1.bf16.msra.mxu0 0
    %1037 = vmatprep.subr.bf16.mxu0 0
    %1038 = vmatpush1.bf16.msra.mxu0 0
    %1039 = vmatprep.subr.bf16.mxu0 0
    %1040 = vmatpush1.bf16.msra.mxu0 0
    %1041 = vmatprep.subr.bf16.mxu0 0
    %1042 = vmatpush1.bf16.msra.mxu0 0
    %1043 = vmatprep.subr.bf16.mxu0 0
    %1044 = vmatpush1.bf16.msra.mxu0 0
    %1045 = vmatprep.subr.bf16.mxu0 0
    %1046 = vmatpush1.bf16.msra.mxu0 0
    %1047 = vmatprep.subr.bf16.mxu0 0
    %1048 = vmatpush1.bf16.msra.mxu0 0
    %1049 = vmatprep.subr.bf16.mxu0 0
    %1050 = vmatpush1.bf16.msra.mxu0 0
    %1051 = vmatprep.mubr.bf16.mxu0 0
    %1052 = vmatmul.mubr.bf16.gmra.mrb[0].mxu0 %v826
    %v1053 = vpop.f32.mrb[0].mxu0
    %v1054 = vadd.f32 0.0, %v1053
    %v1055 = vpop.f32.mrb[0].mxu0
    %v1056 = vadd.f32 0.0, %v1055
    %v1057 = vpop.f32.mrb[0].mxu0
    %v1058 = vpop.f32.mrb[0].mxu0
    %1059 = vdwg.mxu0
    %1060 = vmatprep.subr.bf16.mxu0 %v958
    %1061 = vmatpush1.bf16.msra.mxu0 %v957
    %1062 = vmatprep.subr.bf16.mxu0 %v962
    %1063 = vmatpush1.bf16.msra.mxu0 %v961
    %1064 = vmatprep.subr.bf16.mxu0 %v966
    %1065 = vmatpush1.bf16.msra.mxu0 %v965
    %1066 = vmatprep.subr.bf16.mxu0 %v970
    %1067 = vmatpush1.bf16.msra.mxu0 %v969
    %1068 = vmatprep.subr.bf16.mxu0 %v974
    %1069 = vmatpush1.bf16.msra.mxu0 %v973
    %1070 = vmatprep.subr.bf16.mxu0 %v978
    %1071 = vmatpush1.bf16.msra.mxu0 %v977
    %1072 = vmatprep.subr.bf16.mxu0 %v982
    %1073 = vmatpush1.bf16.msra.mxu0 %v981
    %1074 = vmatprep.subr.bf16.mxu0 %v986
    %1075 = vmatpush1.bf16.msra.mxu0 %v985
    %1076 = vmatprep.subr.bf16.mxu0 0
    %1077 = vmatpush1.bf16.msra.mxu0 0
    %1078 = vmatprep.subr.bf16.mxu0 0
    %1079 = vmatpush1.bf16.msra.mxu0 0
    %1080 = vmatprep.subr.bf16.mxu0 0
    %1081 = vmatpush1.bf16.msra.mxu0 0
    %1082 = vmatprep.subr.bf16.mxu0 0
    %1083 = vmatpush1.bf16.msra.mxu0 0
    %1084 = vmatprep.subr.bf16.mxu0 0
    %1085 = vmatpush1.bf16.msra.mxu0 0
    %1086 = vmatprep.subr.bf16.mxu0 0
    %1087 = vmatpush1.bf16.msra.mxu0 0
    %1088 = vmatprep.subr.bf16.mxu0 0
    %1089 = vmatpush1.bf16.msra.mxu0 0
    %1090 = vmatprep.subr.bf16.mxu0 0
    %1091 = vmatpush1.bf16.msra.mxu0 0
    %1092 = vmatprep.mubr.bf16.mxu0 0
    %1093 = vmatmul.mubr.bf16.gmra.mrb[0].mxu0 %v826
    %v1094 = vpop.f32.mrb[0].mxu0
    %v1095 = vadd.f32 0.0, %v1094
    %v1096 = vpop.f32.mrb[0].mxu0
    %v1097 = vadd.f32 0.0, %v1096
    %v1098 = vpop.f32.mrb[0].mxu0
    %v1099 = vpop.f32.mrb[0].mxu0
    %1100 = vdwg.mxu0
    %v1105 = vrot.slane %v1054, 6
    %v1106 = vrot.slane %v1056, 6
    %v1107 = vrot.slane %v1095, 6
    %v1108 = vrot.slane %v1097, 6
    %v1113 = vrot.slane %v1054, 4
    %v1114 = vrot.slane %v1056, 4
    %v1115 = vrot.slane %v1095, 4
    %v1116 = vrot.slane %v1097, 4
    %v1121 = vrot.slane %v1054, 2
    %v1122 = vrot.slane %v1056, 2
    %v1123 = vrot.slane %v1095, 2
    %v1124 = vrot.slane %v1097, 2
    %vm1129 = vcmask 1041408
    %v1130 = vsel %vm1129, %v1054, %v1105
    %v1131 = vsel %vm1129, %v1056, %v1106
    %v1132 = vsel %vm1129, %v1095, %v1107
    %v1133 = vsel %vm1129, %v1097, %v1108
    %vm1134 = vcmask 1043456
    %v1135 = vsel %vm1134, %v1130, %v1113
    %v1136 = vsel %vm1134, %v1131, %v1114
    %v1137 = vsel %vm1134, %v1132, %v1115
    %v1138 = vsel %vm1134, %v1133, %v1116
    %vm1139 = vcmask 1045504
    %v1140 = vsel %vm1139, %v1135, %v1121
    %v1141 = vsel %vm1139, %v1136, %v1122
    %v1142 = vsel %vm1139, %v1137, %v1123
    %v1143 = vsel %vm1139, %v1138, %v1124
    %v1144 = vld [vmem:[%s1] sm:$0xf]
    %v1145 = vunpack.c.l.bf16 %v1144
    %v1146 = vld [vmem:[%s5] sm:$0xff]
    %v1147 = vunpack.c.l.bf16 %v1146
    %v1148 = vunpack.c.h.bf16 %v1146
    %v1149 = vld [vmem:[%s6] sm:$0xf]
    %v1151 = vlaneseq
    %v1152 = vshrl.u32 %v1151, 7
    %v1153 = vsub.s32 0, %v1152
    %v1154 = vrot.slane %v1149, %v1153
    %v1155 = vlaneseq
    %v1156 = vshrl.u32 %v1155, 7
    %v1157 = vsub.s32 1, %v1156
    %v1158 = vrot.slane %v1149, %v1157
    %v1159 = vlaneseq
    %v1160 = vshrl.u32 %v1159, 7
    %v1161 = vsub.s32 2, %v1160
    %v1162 = vrot.slane %v1149, %v1161
    %v1163 = vlaneseq
    %v1164 = vshrl.u32 %v1163, 7
    %v1165 = vsub.s32 3, %v1164
    %v1166 = vrot.slane %v1149, %v1165
    %1172 = vset.pattern.permute.xlu0 0
    %1173 = vperm.xlu0 %1172, %v1145
    %v1174 = vpop.permute.xlu0 %1173
    %v1178 = vlaneseq
    %v1179 = vshrl.u32 %v1178, 7
    %v1180 = vsub.s32 0, %v1179
    %v1181 = vrot.slane %v1147, %v1180
    %v1182 = vlaneseq
    %v1183 = vshrl.u32 %v1182, 7
    %v1184 = vsub.s32 4, %v1183
    %v1185 = vrot.slane %v1147, %v1184
    %v1186 = vlaneseq
    %v1187 = vshrl.u32 %v1186, 7
    %v1188 = vsub.s32 0, %v1187
    %v1189 = vrot.slane %v1148, %v1188
    %v1190 = vlaneseq
    %v1191 = vshrl.u32 %v1190, 7
    %v1192 = vsub.s32 4, %v1191
    %v1193 = vrot.slane %v1148, %v1192
    %v1198 = vlaneseq
    %v1199 = vshrl.u32 %v1198, 7
    %v1200 = vsub.s32 0, %v1199
    %v1201 = vrot.slane %v1181, %v1200
    %v1202 = vlaneseq
    %v1203 = vshrl.u32 %v1202, 7
    %v1204 = vsub.s32 0, %v1203
    %v1205 = vrot.slane %v1185, %v1204
    %v1206 = vlaneseq
    %v1207 = vshrl.u32 %v1206, 7
    %v1208 = vsub.s32 0, %v1207
    %v1209 = vrot.slane %v1189, %v1208
    %v1210 = vlaneseq
    %v1211 = vshrl.u32 %v1210, 7
    %v1212 = vsub.s32 0, %v1211
    %v1213 = vrot.slane %v1193, %v1212
    %v1214 = vmul.f32 %v1174, %v1201
    %v1215 = vmul.f32 %v1174, %v1205
    %v1216 = vmul.f32 %v1174, %v1209
    %v1217 = vmul.f32 %v1174, %v1213
    %v1218 = vadd.f32 %v1154, %v1214
    %v1219 = vadd.f32 %v1158, %v1215
    %v1220 = vadd.f32 %v1162, %v1216
    %v1221 = vadd.f32 %v1166, %v1217
    %1222 = vset.pattern.permute.xlu0 1
    %1223 = vperm.xlu0 %1222, %v1145
    %v1224 = vpop.permute.xlu0 %1223
    %v1226 = vlaneseq
    %v1227 = vshrl.u32 %v1226, 7
    %v1228 = vsub.s32 1, %v1227
    %v1229 = vrot.slane %v1147, %v1228
    %v1230 = vlaneseq
    %v1231 = vshrl.u32 %v1230, 7
    %v1232 = vsub.s32 5, %v1231
    %v1233 = vrot.slane %v1147, %v1232
    %v1234 = vlaneseq
    %v1235 = vshrl.u32 %v1234, 7
    %v1236 = vsub.s32 1, %v1235
    %v1237 = vrot.slane %v1148, %v1236
    %v1238 = vlaneseq
    %v1239 = vshrl.u32 %v1238, 7
    %v1240 = vsub.s32 5, %v1239
    %v1241 = vrot.slane %v1148, %v1240
    %v1246 = vlaneseq
    %v1247 = vshrl.u32 %v1246, 7
    %v1248 = vsub.s32 1, %v1247
    %v1249 = vrot.slane %v1229, %v1248
    %v1250 = vlaneseq
    %v1251 = vshrl.u32 %v1250, 7
    %v1252 = vsub.s32 1, %v1251
    %v1253 = vrot.slane %v1233, %v1252
    %v1254 = vlaneseq
    %v1255 = vshrl.u32 %v1254, 7
    %v1256 = vsub.s32 1, %v1255
    %v1257 = vrot.slane %v1237, %v1256
    %v1258 = vlaneseq
    %v1259 = vshrl.u32 %v1258, 7
    %v1260 = vsub.s32 1, %v1259
    %v1261 = vrot.slane %v1241, %v1260
    %v1262 = vmul.f32 %v1224, %v1249
    %v1263 = vmul.f32 %v1224, %v1253
    %v1264 = vmul.f32 %v1224, %v1257
    %v1265 = vmul.f32 %v1224, %v1261
    %v1266 = vadd.f32 %v1218, %v1262
    %v1267 = vadd.f32 %v1219, %v1263
    %v1268 = vadd.f32 %v1220, %v1264
    %v1269 = vadd.f32 %v1221, %v1265
    %1270 = vset.pattern.permute.xlu0 2
    %1271 = vperm.xlu0 %1270, %v1145
    %v1272 = vpop.permute.xlu0 %1271
    %v1274 = vlaneseq
    %v1275 = vshrl.u32 %v1274, 7
    %v1276 = vsub.s32 2, %v1275
    %v1277 = vrot.slane %v1147, %v1276
    %v1278 = vlaneseq
    %v1279 = vshrl.u32 %v1278, 7
    %v1280 = vsub.s32 6, %v1279
    %v1281 = vrot.slane %v1147, %v1280
    %v1282 = vlaneseq
    %v1283 = vshrl.u32 %v1282, 7
    %v1284 = vsub.s32 2, %v1283
    %v1285 = vrot.slane %v1148, %v1284
    %v1286 = vlaneseq
    %v1287 = vshrl.u32 %v1286, 7
    %v1288 = vsub.s32 6, %v1287
    %v1289 = vrot.slane %v1148, %v1288
    %v1294 = vlaneseq
    %v1295 = vshrl.u32 %v1294, 7
    %v1296 = vsub.s32 2, %v1295
    %v1297 = vrot.slane %v1277, %v1296
    %v1298 = vlaneseq
    %v1299 = vshrl.u32 %v1298, 7
    %v1300 = vsub.s32 2, %v1299
    %v1301 = vrot.slane %v1281, %v1300
    %v1302 = vlaneseq
    %v1303 = vshrl.u32 %v1302, 7
    %v1304 = vsub.s32 2, %v1303
    %v1305 = vrot.slane %v1285, %v1304
    %v1306 = vlaneseq
    %v1307 = vshrl.u32 %v1306, 7
    %v1308 = vsub.s32 2, %v1307
    %v1309 = vrot.slane %v1289, %v1308
    %v1310 = vmul.f32 %v1272, %v1297
    %v1311 = vmul.f32 %v1272, %v1301
    %v1312 = vmul.f32 %v1272, %v1305
    %v1313 = vmul.f32 %v1272, %v1309
    %v1314 = vadd.f32 %v1266, %v1310
    %v1315 = vadd.f32 %v1267, %v1311
    %v1316 = vadd.f32 %v1268, %v1312
    %v1317 = vadd.f32 %v1269, %v1313
    %1318 = vset.pattern.permute.xlu0 3
    %1319 = vperm.xlu0 %1318, %v1145
    %v1320 = vpop.permute.xlu0 %1319
    %v1322 = vlaneseq
    %v1323 = vshrl.u32 %v1322, 7
    %v1324 = vsub.s32 3, %v1323
    %v1325 = vrot.slane %v1147, %v1324
    %v1326 = vlaneseq
    %v1327 = vshrl.u32 %v1326, 7
    %v1328 = vsub.s32 7, %v1327
    %v1329 = vrot.slane %v1147, %v1328
    %v1330 = vlaneseq
    %v1331 = vshrl.u32 %v1330, 7
    %v1332 = vsub.s32 3, %v1331
    %v1333 = vrot.slane %v1148, %v1332
    %v1334 = vlaneseq
    %v1335 = vshrl.u32 %v1334, 7
    %v1336 = vsub.s32 7, %v1335
    %v1337 = vrot.slane %v1148, %v1336
    %v1342 = vlaneseq
    %v1343 = vshrl.u32 %v1342, 7
    %v1344 = vsub.s32 3, %v1343
    %v1345 = vrot.slane %v1325, %v1344
    %v1346 = vlaneseq
    %v1347 = vshrl.u32 %v1346, 7
    %v1348 = vsub.s32 3, %v1347
    %v1349 = vrot.slane %v1329, %v1348
    %v1350 = vlaneseq
    %v1351 = vshrl.u32 %v1350, 7
    %v1352 = vsub.s32 3, %v1351
    %v1353 = vrot.slane %v1333, %v1352
    %v1354 = vlaneseq
    %v1355 = vshrl.u32 %v1354, 7
    %v1356 = vsub.s32 3, %v1355
    %v1357 = vrot.slane %v1337, %v1356
    %v1358 = vmul.f32 %v1320, %v1345
    %v1359 = vmul.f32 %v1320, %v1349
    %v1360 = vmul.f32 %v1320, %v1353
    %v1361 = vmul.f32 %v1320, %v1357
    %v1362 = vadd.f32 %v1314, %v1358
    %v1363 = vadd.f32 %v1315, %v1359
    %v1364 = vadd.f32 %v1316, %v1360
    %v1365 = vadd.f32 %v1317, %v1361
    %v1366 = vadd.f32 %v1140, %v1362
    %v1367 = vadd.f32 %v1141, %v1363
    %v1368 = vadd.f32 %v1142, %v1364
    %v1369 = vadd.f32 %v1143, %v1365
    %v1370 = vmax.f32 %v1366, 0.0
    %v1371 = vmax.f32 %v1367, 0.0
    %v1372 = vmax.f32 %v1368, 0.0
    %v1373 = vmax.f32 %v1369, 0.0
    %v1374 = vpack.c.bf16 %v1370, %v1370
    %v1375 = vpack.c.bf16 %v1371, %v1371
    %v1376 = vpack.c.bf16 %v1372, %v1372
    %v1377 = vpack.c.bf16 %v1373, %v1373
    %v1378 = vld [vmem:[#allocation8] sm:$0xf]
    %v1379 = vld [vmem:[#allocation8 + $0x4] sm:$0xf]
    %v1380 = vld [vmem:[#allocation8 + $0x8] sm:$0xf]
    %v1381 = vld [vmem:[#allocation8 + $0xc] sm:$0xf]
    %v1382 = vld [vmem:[#allocation8 + $0x10] sm:$0xf]
    %v1383 = vld [vmem:[#allocation8 + $0x14] sm:$0xf]
    %v1384 = vld [vmem:[#allocation8 + $0x18] sm:$0xf]
    %v1385 = vld [vmem:[#allocation8 + $0x1c] sm:$0xf]
    %v1386 = vld [vmem:[#allocation8 + $0x20] sm:$0xf]
    %v1387 = vld [vmem:[#allocation8 + $0x24] sm:$0xf]
    %v1388 = vld [vmem:[#allocation8 + $0x28] sm:$0xf]
    %v1389 = vld [vmem:[#allocation8 + $0x2c] sm:$0xf]
    %v1390 = vld [vmem:[#allocation8 + $0x30] sm:$0xf]
    %v1391 = vld [vmem:[#allocation8 + $0x34] sm:$0xf]
    %v1392 = vld [vmem:[#allocation8 + $0x38] sm:$0xf]
    %v1393 = vld [vmem:[#allocation8 + $0x3c] sm:$0xf]
    %v1394 = vld [vmem:[#allocation8 + $0x40] sm:$0xf]
    %v1395 = vld [vmem:[#allocation8 + $0x44] sm:$0xf]
    %v1396 = vld [vmem:[#allocation8 + $0x48] sm:$0xf]
    %v1397 = vld [vmem:[#allocation8 + $0x4c] sm:$0xf]
    %v1398 = vld [vmem:[#allocation8 + $0x50] sm:$0xf]
    %v1399 = vld [vmem:[#allocation8 + $0x54] sm:$0xf]
    %v1400 = vld [vmem:[#allocation8 + $0x58] sm:$0xf]
    %v1401 = vld [vmem:[#allocation8 + $0x5c] sm:$0xf]
    %v1402 = vld [vmem:[#allocation8 + $0x60] sm:$0xf]
    %v1403 = vld [vmem:[#allocation8 + $0x64] sm:$0xf]
    %v1404 = vld [vmem:[#allocation8 + $0x68] sm:$0xf]
    %v1405 = vld [vmem:[#allocation8 + $0x6c] sm:$0xf]
    %v1406 = vld [vmem:[#allocation8 + $0x70] sm:$0xf]
    %v1407 = vld [vmem:[#allocation8 + $0x74] sm:$0xf]
    %v1408 = vld [vmem:[#allocation8 + $0x78] sm:$0xf]
    %v1409 = vld [vmem:[#allocation8 + $0x7c] sm:$0xf]
    %v1410 = vld [vmem:[#allocation8 + $0x80] sm:$0xf]
    %v1411 = vld [vmem:[#allocation8 + $0x84] sm:$0xf]
    %v1412 = vld [vmem:[#allocation8 + $0x88] sm:$0xf]
    %v1413 = vld [vmem:[#allocation8 + $0x8c] sm:$0xf]
    %v1414 = vld [vmem:[#allocation8 + $0x90] sm:$0xf]
    %v1415 = vld [vmem:[#allocation8 + $0x94] sm:$0xf]
    %v1416 = vld [vmem:[#allocation8 + $0x98] sm:$0xf]
    %v1417 = vld [vmem:[#allocation8 + $0x9c] sm:$0xf]
    %v1418 = vld [vmem:[#allocation8 + $0xa0] sm:$0xf]
    %v1419 = vld [vmem:[#allocation8 + $0xa4] sm:$0xf]
    %v1420 = vld [vmem:[#allocation8 + $0xa8] sm:$0xf]
    %v1421 = vld [vmem:[#allocation8 + $0xac] sm:$0xf]
    %v1422 = vld [vmem:[#allocation8 + $0xb0] sm:$0xf]
    %v1423 = vld [vmem:[#allocation8 + $0xb4] sm:$0xf]
    %v1424 = vld [vmem:[#allocation8 + $0xb8] sm:$0xf]
    %v1425 = vld [vmem:[#allocation8 + $0xbc] sm:$0xf]
    %v1426 = vld [vmem:[#allocation8 + $0xc0] sm:$0xf]
    %v1427 = vld [vmem:[#allocation8 + $0xc4] sm:$0xf]
    %v1428 = vld [vmem:[#allocation8 + $0xc8] sm:$0xf]
    %v1429 = vld [vmem:[#allocation8 + $0xcc] sm:$0xf]
    %v1430 = vld [vmem:[#allocation8 + $0xd0] sm:$0xf]
    %v1431 = vld [vmem:[#allocation8 + $0xd4] sm:$0xf]
    %v1432 = vld [vmem:[#allocation8 + $0xd8] sm:$0xf]
    %v1433 = vld [vmem:[#allocation8 + $0xdc] sm:$0xf]
    %v1434 = vld [vmem:[#allocation8 + $0xe0] sm:$0xf]
    %v1435 = vld [vmem:[#allocation8 + $0xe4] sm:$0xf]
    %v1436 = vld [vmem:[#allocation8 + $0xe8] sm:$0xf]
    %v1437 = vld [vmem:[#allocation8 + $0xec] sm:$0xf]
    %v1438 = vld [vmem:[#allocation8 + $0xf0] sm:$0xf]
    %v1439 = vld [vmem:[#allocation8 + $0xf4] sm:$0xf]
    %v1440 = vld [vmem:[#allocation8 + $0xf8] sm:$0xf]
    %v1441 = vld [vmem:[#allocation8 + $0xfc] sm:$0xf]
    %v1442 = vld [vmem:[%s8] sm:$0x1]
    %v1444 = vlaneseq
    %v1445 = vshrl.u32 %v1444, 7
    %v1446 = vsub.s32 0, %v1445
    %v1447 = vrot.slane %v1442, %v1446
    %v1513 = vunpack.c.l.b16 %v1378
    %v1514 = vunpack.c.l.b16 %v1379
    %v1515 = vunpack.c.l.b16 %v1380
    %v1516 = vunpack.c.l.b16 %v1381
    %v1517 = vunpack.c.l.b16 %v1382
    %v1518 = vunpack.c.l.b16 %v1383
    %v1519 = vunpack.c.l.b16 %v1384
    %v1520 = vunpack.c.l.b16 %v1385
    %v1521 = vunpack.c.l.b16 %v1386
    %v1522 = vunpack.c.l.b16 %v1387
    %v1523 = vunpack.c.l.b16 %v1388
    %v1524 = vunpack.c.l.b16 %v1389
    %v1525 = vunpack.c.l.b16 %v1390
    %v1526 = vunpack.c.l.b16 %v1391
    %v1527 = vunpack.c.l.b16 %v1392
    %v1528 = vunpack.c.l.b16 %v1393
    %v1529 = vunpack.c.l.b16 %v1394
    %v1530 = vunpack.c.l.b16 %v1395
    %v1531 = vunpack.c.l.b16 %v1396
    %v1532 = vunpack.c.l.b16 %v1397
    %v1533 = vunpack.c.l.b16 %v1398
    %v1534 = vunpack.c.l.b16 %v1399
    %v1535 = vunpack.c.l.b16 %v1400
    %v1536 = vunpack.c.l.b16 %v1401
    %v1537 = vunpack.c.l.b16 %v1402
    %v1538 = vunpack.c.l.b16 %v1403
    %v1539 = vunpack.c.l.b16 %v1404
    %v1540 = vunpack.c.l.b16 %v1405
    %v1541 = vunpack.c.l.b16 %v1406
    %v1542 = vunpack.c.l.b16 %v1407
    %v1543 = vunpack.c.l.b16 %v1408
    %v1544 = vunpack.c.l.b16 %v1409
    %v1545 = vunpack.c.l.b16 %v1410
    %v1546 = vunpack.c.l.b16 %v1411
    %v1547 = vunpack.c.l.b16 %v1412
    %v1548 = vunpack.c.l.b16 %v1413
    %v1549 = vunpack.c.l.b16 %v1414
    %v1550 = vunpack.c.l.b16 %v1415
    %v1551 = vunpack.c.l.b16 %v1416
    %v1552 = vunpack.c.l.b16 %v1417
    %v1553 = vunpack.c.l.b16 %v1418
    %v1554 = vunpack.c.l.b16 %v1419
    %v1555 = vunpack.c.l.b16 %v1420
    %v1556 = vunpack.c.l.b16 %v1421
    %v1557 = vunpack.c.l.b16 %v1422
    %v1558 = vunpack.c.l.b16 %v1423
    %v1559 = vunpack.c.l.b16 %v1424
    %v1560 = vunpack.c.l.b16 %v1425
    %v1561 = vunpack.c.l.b16 %v1426
    %v1562 = vunpack.c.l.b16 %v1427
    %v1563 = vunpack.c.l.b16 %v1428
    %v1564 = vunpack.c.l.b16 %v1429
    %v1565 = vunpack.c.l.b16 %v1430
    %v1566 = vunpack.c.l.b16 %v1431
    %v1567 = vunpack.c.l.b16 %v1432
    %v1568 = vunpack.c.l.b16 %v1433
    %v1569 = vunpack.c.l.b16 %v1434
    %v1570 = vunpack.c.l.b16 %v1435
    %v1571 = vunpack.c.l.b16 %v1436
    %v1572 = vunpack.c.l.b16 %v1437
    %v1573 = vunpack.c.l.b16 %v1438
    %v1574 = vunpack.c.l.b16 %v1439
    %v1575 = vunpack.c.l.b16 %v1440
    %v1576 = vunpack.c.l.b16 %v1441
    %v1577 = vpack.c.b16 %v1514, %v1513
    %v1578 = vpack.c.b16 %v1516, %v1515
    %v1579 = vpack.c.b16 %v1518, %v1517
    %v1580 = vpack.c.b16 %v1520, %v1519
    %v1581 = vpack.c.b16 %v1522, %v1521
    %v1582 = vpack.c.b16 %v1524, %v1523
    %v1583 = vpack.c.b16 %v1526, %v1525
    %v1584 = vpack.c.b16 %v1528, %v1527
    %v1585 = vpack.c.b16 %v1530, %v1529
    %v1586 = vpack.c.b16 %v1532, %v1531
    %v1587 = vpack.c.b16 %v1534, %v1533
    %v1588 = vpack.c.b16 %v1536, %v1535
    %v1589 = vpack.c.b16 %v1538, %v1537
    %v1590 = vpack.c.b16 %v1540, %v1539
    %v1591 = vpack.c.b16 %v1542, %v1541
    %v1592 = vpack.c.b16 %v1544, %v1543
    %v1593 = vpack.c.b16 %v1546, %v1545
    %v1594 = vpack.c.b16 %v1548, %v1547
    %v1595 = vpack.c.b16 %v1550, %v1549
    %v1596 = vpack.c.b16 %v1552, %v1551
    %v1597 = vpack.c.b16 %v1554, %v1553
    %v1598 = vpack.c.b16 %v1556, %v1555
    %v1599 = vpack.c.b16 %v1558, %v1557
    %v1600 = vpack.c.b16 %v1560, %v1559
    %v1601 = vpack.c.b16 %v1562, %v1561
    %v1602 = vpack.c.b16 %v1564, %v1563
    %v1603 = vpack.c.b16 %v1566, %v1565
    %v1604 = vpack.c.b16 %v1568, %v1567
    %v1605 = vpack.c.b16 %v1570, %v1569
    %v1606 = vpack.c.b16 %v1572, %v1571
    %v1607 = vpack.c.b16 %v1574, %v1573
    %v1608 = vpack.c.b16 %v1576, %v1575
    %1641 = vmatprep.subr.bf16.mxu0 0
    %1642 = vmatpush1.bf16.msra.mxu0 %v1577
    %1643 = vmatprep.subr.bf16.mxu0 0
    %1644 = vmatpush1.bf16.msra.mxu0 %v1578
    %1645 = vmatprep.subr.bf16.mxu0 0
    %1646 = vmatpush1.bf16.msra.mxu0 %v1579
    %1647 = vmatprep.subr.bf16.mxu0 0
    %1648 = vmatpush1.bf16.msra.mxu0 %v1580
    %1649 = vmatprep.subr.bf16.mxu0 0
    %1650 = vmatpush1.bf16.msra.mxu0 %v1581
    %1651 = vmatprep.subr.bf16.mxu0 0
    %1652 = vmatpush1.bf16.msra.mxu0 %v1582
    %1653 = vmatprep.subr.bf16.mxu0 0
    %1654 = vmatpush1.bf16.msra.mxu0 %v1583
    %1655 = vmatprep.subr.bf16.mxu0 0
    %1656 = vmatpush1.bf16.msra.mxu0 %v1584
    %1657 = vmatprep.subr.bf16.mxu0 0
    %1658 = vmatpush1.bf16.msra.mxu0 %v1585
    %1659 = vmatprep.subr.bf16.mxu0 0
    %1660 = vmatpush1.bf16.msra.mxu0 %v1586
    %1661 = vmatprep.subr.bf16.mxu0 0
    %1662 = vmatpush1.bf16.msra.mxu0 %v1587
    %1663 = vmatprep.subr.bf16.mxu0 0
    %1664 = vmatpush1.bf16.msra.mxu0 %v1588
    %1665 = vmatprep.subr.bf16.mxu0 0
    %1666 = vmatpush1.bf16.msra.mxu0 %v1589
    %1667 = vmatprep.subr.bf16.mxu0 0
    %1668 = vmatpush1.bf16.msra.mxu0 %v1590
    %1669 = vmatprep.subr.bf16.mxu0 0
    %1670 = vmatpush1.bf16.msra.mxu0 %v1591
    %1671 = vmatprep.subr.bf16.mxu0 0
    %1672 = vmatpush1.bf16.msra.mxu0 %v1592
    %1673 = vmatprep.mubr.bf16.mxu0 %v1375
    %1674 = vmatmul.mubr.bf16.gmra.mrb[0].mxu0 %v1374
    %v1675 = vpop.f32.mrb[0].mxu0
    %v1676 = vadd.f32 %v1447, %v1675
    %v1677 = vpop.f32.mrb[0].mxu0
    %v1678 = vpop.f32.mrb[0].mxu0
    %v1679 = vpop.f32.mrb[0].mxu0
    %1680 = vdwg.mxu0
    %1681 = vmatprep.subr.bf16.mxu0 0
    %1682 = vmatpush1.bf16.msra.mxu0 %v1593
    %1683 = vmatprep.subr.bf16.mxu0 0
    %1684 = vmatpush1.bf16.msra.mxu0 %v1594
    %1685 = vmatprep.subr.bf16.mxu0 0
    %1686 = vmatpush1.bf16.msra.mxu0 %v1595
    %1687 = vmatprep.subr.bf16.mxu0 0
    %1688 = vmatpush1.bf16.msra.mxu0 %v1596
    %1689 = vmatprep.subr.bf16.mxu0 0
    %1690 = vmatpush1.bf16.msra.mxu0 %v1597
    %1691 = vmatprep.subr.bf16.mxu0 0
    %1692 = vmatpush1.bf16.msra.mxu0 %v1598
    %1693 = vmatprep.subr.bf16.mxu0 0
    %1694 = vmatpush1.bf16.msra.mxu0 %v1599
    %1695 = vmatprep.subr.bf16.mxu0 0
    %1696 = vmatpush1.bf16.msra.mxu0 %v1600
    %1697 = vmatprep.subr.bf16.mxu0 0
    %1698 = vmatpush1.bf16.msra.mxu0 %v1601
    %1699 = vmatprep.subr.bf16.mxu0 0
    %1700 = vmatpush1.bf16.msra.mxu0 %v1602
    %1701 = vmatprep.subr.bf16.mxu0 0
    %1702 = vmatpush1.bf16.msra.mxu0 %v1603
    %1703 = vmatprep.subr.bf16.mxu0 0
    %1704 = vmatpush1.bf16.msra.mxu0 %v1604
    %1705 = vmatprep.subr.bf16.mxu0 0
    %1706 = vmatpush1.bf16.msra.mxu0 %v1605
    %1707 = vmatprep.subr.bf16.mxu0 0
    %1708 = vmatpush1.bf16.msra.mxu0 %v1606
    %1709 = vmatprep.subr.bf16.mxu0 0
    %1710 = vmatpush1.bf16.msra.mxu0 %v1607
    %1711 = vmatprep.subr.bf16.mxu0 0
    %1712 = vmatpush1.bf16.msra.mxu0 %v1608
    %1713 = vmatprep.mubr.bf16.mxu0 %v1377
    %1714 = vmatmul.mubr.bf16.gmra.mrb[0].mxu0 %v1376
    %v1715 = vpop.f32.mrb[0].mxu0
    %v1716 = vadd.f32 %v1676, %v1715
    %v1717 = vpop.f32.mrb[0].mxu0
    %v1718 = vpop.f32.mrb[0].mxu0
    %v1719 = vpop.f32.mrb[0].mxu0
    %1720 = vdwg.mxu0
    %v1721 = vmax.f32 %v1716, 0.0
    %1722 = vst [vmem:[#allocation10] sm:$0xff] %v1721
    // Predicated region
    $region54: #{tpu_custom_call.1} parent=1 // pred_check
      _
    $region55: #{tpu_custom_call.1} parent=1 // pred_check_branch
      %1724 = sbr.rel (0) target = $region57
    $region56: #{tpu_custom_call.1} parent=1 // pred_region
      %s1726 = ssub.s32 128, 128
      %1727 = vsyncadd [#allocation4], %s1726
      %s1729 = sshll.u32 [#allocation10], 4
      %s1730 = int_to_ptr.vmem [resolvable:$true] %s1729
      %1732 = dma.vmem_to_hbm [thread:$0]  %s1730, 128, %s9, [#allocation4]
    $region57: #{tpu_custom_call.1} parent=1 // pred_fallthru
      _
    // Predicated region
    $region58: #{tpu_custom_call.1} parent=1 // pred_check
      _
    $region59: #{tpu_custom_call.1} parent=1 // pred_check_branch
      %1734 = sbr.rel (0) target = $region61
    $region60: #{tpu_custom_call.1} parent=1 // pred_region
      %1735 = dma.done [#allocation4], 128
    $region61: #{tpu_custom_call.1} parent=1 // pred_fallthru
      _
    %1736 = vsyncpa [#allocation3], 1
    %1737 = vsyncpa [#allocation6], 1
    %1738 = vsyncpa [#allocation9], 1
    %1739 = vsyncpa [#allocation4], 1

</llo_original>
